<compile_context>
chip_gen: v6e
topology: v6e:2x2x1
jax: 0.10.0
libtpu: 0.0.40
codegen_flags: <defaults>
</compile_context>

<pallas_src>
import functools
import math

import numpy as np
import jax
import jax.numpy as jnp
from jax.experimental import pallas as pl
from jax.experimental.pallas import tpu as pltpu

# ---- static configuration (mirrors env-var defaults of the PyTorch module) ----
NUM_DIR = 8            # DTOffsetConfig.num_classes default
MASK_THRESHOLD = 0.5   # os.environ 'mask_threshold' default
MASK_WEIGHT = 1.0      # os.environ 'mask_weight' default
DIRECTION_WEIGHT = 1.0 # os.environ 'direction_weight' default
MAX_DISTANCE = 5.0     # DTOffsetConfig.max_distance
MIN_DISTANCE = 0.0     # DTOffsetConfig.min_distance


def _round_up(x, m):
    return ((x + m - 1) // m) * m


def _interp_matrix(out_size, in_size):
    """Row-normalized bilinear (align_corners=True) interpolation matrix (out, in)."""
    W = np.zeros((out_size, in_size), np.float32)
    for o in range(out_size):
        src = 0.0 if out_size == 1 else o * (in_size - 1) / (out_size - 1)
        i0 = min(int(np.floor(src)), in_size - 1)
        i1 = min(i0 + 1, in_size - 1)
        f = src - i0
        W[o, i0] += 1.0 - f
        W[o, i1] += f
    return W


def _segfix_kernel(pm_ref, pd_ref, seg_ref, dist_ref, ang_ref, wh_ref, wwt_ref,
                   mS_ref, mN_ref, dS_ref, dN_ref,
                   tmask_ref, tdir_ref, mcol_ref,
                   *, h16, num_dir, thr_logit):
    i = pl.program_id(1)   # H-strip index (batch index is the parallel axis 0)

    # ---- stage 1 (once per image): width upsample, one bf16 matmul per head ----
    @pl.when(i == 0)
    def _stage1():
        wwt = wwt_ref[...]                                          # (w, Wp) bf16
        tmask_ref[...] = jnp.dot(pm_ref[0], wwt,
                                 preferred_element_type=jnp.float32
                                 ).astype(jnp.bfloat16)
        td = jnp.dot(pd_ref[0], wwt, preferred_element_type=jnp.float32)
        tdir_ref[...] = td.astype(jnp.bfloat16)
        # Fixed per-column shift for the direction softmax.  Bilinear weights are
        # non-negative and row-normalized, so every stage-2 output in a column is
        # bounded by this max; the zero padding rows guarantee mcol >= 0 so the
        # padded GT rows (u == 0) are also covered.
        mcol_ref[...] = jnp.max(td, axis=0, keepdims=True)

    # ---- init per-image accumulators (output blocks resident across i) ---------
    @pl.when(i == 0)
    def _init():
        mS_ref[...] = jnp.zeros_like(mS_ref)
        mN_ref[...] = jnp.zeros_like(mN_ref)
        dS_ref[...] = jnp.zeros_like(dS_ref)
        dN_ref[...] = jnp.zeros_like(dN_ref)

    wh = wh_ref[...]        # (tH, h16) bf16
    seg = seg_ref[0]        # (tH, Wp) int32
    dist = dist_ref[0]      # (tH, Wp) f32
    ang = ang_ref[0]        # (tH, Wp) f32

    # ---- stage 2, mask head: height upsample of the current strip (bf16 MXU) ----
    l0 = jnp.dot(wh, tmask_ref[pl.ds(0, h16), :], preferred_element_type=jnp.float32)
    l1 = jnp.dot(wh, tmask_ref[pl.ds(h16, h16), :], preferred_element_type=jnp.float32)

    # ---- gt mask (distance_to_mask_label) ---------------------------------------
    inrange = jnp.logical_and(dist >= MIN_DISTANCE, dist <= MAX_DISTANCE)
    gt_mask = jnp.where(seg == -1, -1, jnp.where(inrange, 1, 0)).astype(jnp.int32)

    # ---- mask CE per-class partial sums (2 classes, single-exp LSE) --------------
    d10 = l1 - l0
    mlse = jnp.maximum(l0, l1) + jnp.log(1.0 + jnp.exp(-jnp.abs(d10)))
    eq0 = (gt_mask == 0).astype(jnp.float32)
    eq1 = (gt_mask == 1).astype(jnp.float32)
    mS_rows = jnp.concatenate(
        [jnp.sum(eq0 * (mlse - l0), axis=0, keepdims=True),
         jnp.sum(eq1 * (mlse - l1), axis=0, keepdims=True)], axis=0)      # (2, Wp)
    mN_rows = jnp.concatenate(
        [jnp.sum(eq0, axis=0, keepdims=True),
         jnp.sum(eq1, axis=0, keepdims=True)], axis=0)                    # (2, Wp)
    mS_ref[...] += mS_rows[None]
    mN_ref[...] += mN_rows[None]

    # binary_pred_mask == 0  <=>  softmax(pred_mask)[1] <= thr  <=>  l1 - l0 <= logit(thr)
    extra_ignore = d10 <= thr_logit

    # ---- gt direction (angle_to_direction_label), arithmetic ( ]-binning ---------
    step = 360.0 / num_dir
    bin_i = jnp.ceil((ang + (180.0 - 0.5 * step)) / step).astype(jnp.int32)
    bin_i = jnp.where(bin_i >= num_dir, bin_i - num_dir, bin_i)   # wrap bin -> class 0
    bin_i = jnp.clip(bin_i, 0, num_dir - 1)
    lab = jnp.where(seg == -1, -1, bin_i)
    lab = jnp.where(extra_ignore, -1, lab)

    # ---- direction head: stream channels, fixed-shift softmax, fused class sums --
    m_col = jnp.broadcast_to(mcol_ref[...], l0.shape)   # hoisted broadcast
    run_s = jnp.zeros_like(l0)
    dN_rows = []
    dB_rows = []
    for c in range(num_dir):
        u = jnp.dot(wh, tdir_ref[pl.ds(c * h16, h16), :],
                    preferred_element_type=jnp.float32)            # (tH, Wp) f32
        eqc = (lab == c).astype(jnp.float32)
        run_s = run_s + jnp.exp(u - m_col)                         # 1 exp / channel
        dN_rows.append(jnp.sum(eqc, axis=0, keepdims=True))
        dB_rows.append(jnp.sum(eqc * u, axis=0, keepdims=True))
    lse = m_col + jnp.log(jnp.maximum(run_s, 1e-30))
    dL_rows = []
    for c in range(num_dir):
        eqc = (lab == c).astype(jnp.float32)
        dL_rows.append(jnp.sum(eqc * lse, axis=0, keepdims=True))
    dS_rows = jnp.concatenate(dL_rows, axis=0) - jnp.concatenate(dB_rows, axis=0)
    dN_cat = jnp.concatenate(dN_rows, axis=0)
    dS_ref[...] += dS_rows[None]
    dN_ref[...] += dN_cat[None]


def _default_strip_rows():
    try:
        kind = jax.devices()[0].device_kind.lower()
    except Exception:
        kind = ""
    # v7x-class parts have 64 MiB VMEM per TensorCore -> smaller strips.
    return 128 if "7" in kind else 256


def segfix_loss(pred_mask, pred_direction, seg_label_map, distance_map, angle_map,
                *, strip_rows=None, mask_threshold=MASK_THRESHOLD):
    N, cm, h, w = pred_mask.shape
    assert cm == 2
    C = pred_direction.shape[1]
    assert C == NUM_DIR
    H, W = seg_label_map.shape[1], seg_label_map.shape[2]

    if strip_rows is None:
        strip_rows = _default_strip_rows()
    strip_rows = max(16, _round_up(int(strip_rows), 16))

    # ---- pad GT maps to lane/sublane friendly sizes; pad pixels carry seg == -1 --
    Wp = max(128, _round_up(W, 128))
    Hp = _round_up(H, 16)
    if Hp <= strip_rows:
        tH = Hp
    else:
        tH = strip_rows
        Hp = _round_up(H, tH)
    nH = Hp // tH

    if (Hp, Wp) == (H, W):           # fast path: skip the padding round-trip
        seg_p = seg_label_map.astype(jnp.int32)
        dist_p = distance_map.astype(jnp.float32)
        ang_p = angle_map.astype(jnp.float32)
    else:
        seg_p = jnp.full((N, Hp, Wp), -1, jnp.int32).at[:, :H, :W].set(
            seg_label_map.astype(jnp.int32))
        dist_p = jnp.zeros((N, Hp, Wp), jnp.float32).at[:, :H, :W].set(
            distance_map.astype(jnp.float32))
        ang_p = jnp.zeros((N, Hp, Wp), jnp.float32).at[:, :H, :W].set(
            angle_map.astype(jnp.float32))

    # ---- prediction logits: channel-major, rows padded to a multiple of 16 -------
    h16 = _round_up(h, 16)
    pm_b = pred_mask.astype(jnp.bfloat16)
    pd_b = pred_direction.astype(jnp.bfloat16)
    if h16 != h:
        pm_b = jnp.zeros((N, 2, h16, w), jnp.bfloat16).at[:, :, :h, :].set(pm_b)
        pd_b = jnp.zeros((N, C, h16, w), jnp.bfloat16).at[:, :, :h, :].set(pd_b)
    pm_r = pm_b.reshape(N, 2 * h16, w)
    pd_r = pd_b.reshape(N, C * h16, w)

    wh_np = np.zeros((Hp, h16), np.float32)
    wh_np[:H, :h] = _interp_matrix(H, h)
    wwt_np = np.zeros((w, Wp), np.float32)
    wwt_np[:, :W] = _interp_matrix(W, w).T
    wh = jnp.asarray(wh_np, dtype=jnp.bfloat16)     # (Hp, h16)
    wwt = jnp.asarray(wwt_np, dtype=jnp.bfloat16)   # (w, Wp)

    thr_logit = float(math.log(mask_threshold) - math.log1p(-mask_threshold))

    kernel = functools.partial(_segfix_kernel, h16=h16, num_dir=C, thr_logit=thr_logit)

    vmem_limit = (40 if tH <= 128 else 64) * 1024 * 1024

    out_shapes = (
        jax.ShapeDtypeStruct((N, 2, Wp), jnp.float32),   # mask CE sums
        jax.ShapeDtypeStruct((N, 2, Wp), jnp.float32),   # mask class counts
        jax.ShapeDtypeStruct((N, C, Wp), jnp.float32),   # dir CE sums
        jax.ShapeDtypeStruct((N, C, Wp), jnp.float32),   # dir class counts
    )

    mS, mN, dS, dN = pl.pallas_call(
        kernel,
        out_shape=out_shapes,
        grid_spec=pltpu.PrefetchScalarGridSpec(
            num_scalar_prefetch=0,
            grid=(N, nH),
            in_specs=[
                pl.BlockSpec((1, 2 * h16, w), lambda n, i: (n, 0, 0)),  # mask logits (bf16)
                pl.BlockSpec((1, C * h16, w), lambda n, i: (n, 0, 0)),  # dir logits (bf16)
                pl.BlockSpec((1, tH, Wp), lambda n, i: (n, i, 0)),      # seg strip
                pl.BlockSpec((1, tH, Wp), lambda n, i: (n, i, 0)),      # dist strip
                pl.BlockSpec((1, tH, Wp), lambda n, i: (n, i, 0)),      # angle strip
                pl.BlockSpec((tH, h16), lambda n, i: (i, 0)),           # Wh strip (bf16)
                pl.BlockSpec((w, Wp), lambda n, i: (0, 0)),             # Ww^T (bf16)
            ],
            out_specs=[
                pl.BlockSpec((1, 2, Wp), lambda n, i: (n, 0, 0)),
                pl.BlockSpec((1, 2, Wp), lambda n, i: (n, 0, 0)),
                pl.BlockSpec((1, C, Wp), lambda n, i: (n, 0, 0)),
                pl.BlockSpec((1, C, Wp), lambda n, i: (n, 0, 0)),
            ],
            scratch_shapes=[
                pltpu.VMEM((2 * h16, Wp), jnp.bfloat16),   # stage-1 cache, mask head
                pltpu.VMEM((C * h16, Wp), jnp.bfloat16),   # stage-1 cache, dir head
                pltpu.VMEM((1, Wp), jnp.float32),          # per-column softmax shift
            ],
        ),
        compiler_params=pltpu.CompilerParams(
            dimension_semantics=("parallel", "arbitrary"),
            vmem_limit_bytes=vmem_limit,
        ),
    )(pm_r, pd_r, seg_p, dist_p, ang_p, wh, wwt)

    # ---- tiny JAX epilogue: weighted-mean CE with calc_weights class weights -----
    def weighted_ce(S, Nc):
        S = jnp.sum(S, axis=(0, 2))       # (C,)
        Nc = jnp.sum(Nc, axis=(0, 2))     # (C,)
        wts = 1.0 - Nc / jnp.sum(Nc)      # calc_weights
        # NOTE: NaN if a head has zero valid pixels -- same as the reference.
        return jnp.sum(wts * S) / jnp.sum(wts * Nc)

    mask_loss = weighted_ce(mS, mN)
    dir_loss = weighted_ce(dS, dN)
    return MASK_WEIGHT * mask_loss + DIRECTION_WEIGHT * dir_loss


# --------------------------- pure-JAX reference (sanity) ---------------------------
def _reference_loss(pred_mask, pred_direction, seg, dist, ang):
    H, W = seg.shape[1:]
    h, w = pred_mask.shape[2:]
    wh = jnp.asarray(_interp_matrix(H, h))
    ww = jnp.asarray(_interp_matrix(W, w))

    def up(x):
        t = jnp.einsum('Hh,nchw->ncHw', wh, x)
        return jnp.einsum('ncHw,Ww->ncHW', t, ww)

    pm = up(pred_mask)
    pd = up(pred_direction)

    gt = jnp.where((dist >= MIN_DISTANCE) & (dist <= MAX_DISTANCE), 1, 0)
    gt = jnp.where(seg == -1, -1, gt)

    def weighted_ce(logits, target, num_classes):
        valid = target != -1
        tc = jnp.clip(target, 0, num_classes - 1)
        counts = jnp.stack([jnp.sum(((target == c) & valid).astype(jnp.float32))
                            for c in range(num_classes)])
        wts = 1.0 - counts / jnp.sum(counts)
        logp = jax.nn.log_softmax(logits, axis=1)
        nll = -jnp.take_along_axis(logp, tc[:, None], axis=1)[:, 0]
        pixw = jnp.where(valid, wts[tc], 0.0)
        return jnp.sum(pixw * nll) / jnp.sum(pixw)

    mask_loss = weighted_ce(pm, gt, 2)
    p1 = jax.nn.softmax(pm, axis=1)[:, 1]
    extra_ignore = p1 <= MASK_THRESHOLD
    step = 360.0 / NUM_DIR
    lab = jnp.zeros_like(seg)
    for i in range(1, NUM_DIR):
        mid = -180.0 + step * i
        lab = jnp.where((ang > mid - step / 2.0) & (ang <= mid + step / 2.0), i, lab)
    lab = jnp.where(seg == -1, -1, lab)
    lab = jnp.where(extra_ignore, -1, lab)
    dir_loss = weighted_ce(pd, lab, NUM_DIR)
    return MASK_WEIGHT * mask_loss + DIRECTION_WEIGHT * dir_loss


if __name__ == "__main__":
    key = jax.random.PRNGKey(0)
    k1, k2, k3, k4, k5 = jax.random.split(key, 5)

    N, h, w = 2, 8, 8          # prediction resolution
    H, W = 16, 16              # ground-truth resolution (gt_size)

    pred_mask = jax.random.normal(k1, (N, 2, h, w), jnp.float32)
    pred_direction = jax.random.normal(k2, (N, NUM_DIR, h, w), jnp.float32)
    seg_label_map = jax.random.randint(k3, (N, H, W), -1, 5).astype(jnp.int32)
    distance_map = jax.random.uniform(k4, (N, H, W), jnp.float32, 0.0, 12.0)
    angle_map = jax.random.uniform(k5, (N, H, W), jnp.float32, -180.0, 180.0)

    loss = segfix_loss(pred_mask, pred_direction, seg_label_map, distance_map, angle_map)
    loss = jax.block_until_ready(loss)

    ref = jax.block_until_ready(
        _reference_loss(pred_mask, pred_direction, seg_label_map, distance_map, angle_map))

    np.testing.assert_allclose(np.asarray(loss), np.asarray(ref), rtol=5e-2, atol=5e-2)
    print("KERNEL_OK")
</pallas_src>

<mosaic_0001>
module attributes {stable_mosaic.version = 11 : i64} {
  func.func @_segfix_kernel(%arg0: i32, %arg1: i32, %arg2: memref<1x32x8xbf16, #tpu.memory_space<vmem>>, %arg3: memref<1x128x8xbf16, #tpu.memory_space<vmem>>, %arg4: memref<1x16x128xi32, #tpu.memory_space<vmem>>, %arg5: memref<1x16x128xf32, #tpu.memory_space<vmem>>, %arg6: memref<1x16x128xf32, #tpu.memory_space<vmem>>, %arg7: memref<16x16xbf16, #tpu.memory_space<vmem>>, %arg8: memref<8x128xbf16, #tpu.memory_space<vmem>>, %arg9: memref<1x2x128xf32, #tpu.memory_space<vmem>>, %arg10: memref<1x2x128xf32, #tpu.memory_space<vmem>>, %arg11: memref<1x8x128xf32, #tpu.memory_space<vmem>>, %arg12: memref<1x8x128xf32, #tpu.memory_space<vmem>>, %arg13: memref<32x128xbf16, #tpu.memory_space<vmem>>, %arg14: memref<128x128xbf16, #tpu.memory_space<vmem>>, %arg15: memref<1x128xf32, #tpu.memory_space<vmem>>) attributes {dimension_semantics = [#tpu.dimension_semantics<parallel>, #tpu.dimension_semantics<arbitrary>], iteration_bounds = array<i64: 2, 1>, scalar_prefetch = 0 : i64, scratch_operands = 3 : i64, tpu.core_type = #tpu.core_type<tc>, window_params = [{transform_indices = @transform_0, window_bounds = array<i64: 1, 32, 8>}, {transform_indices = @transform_1, window_bounds = array<i64: 1, 128, 8>}, {transform_indices = @transform_2, window_bounds = array<i64: 1, 16, 128>}, {transform_indices = @transform_3, window_bounds = array<i64: 1, 16, 128>}, {transform_indices = @transform_4, window_bounds = array<i64: 1, 16, 128>}, {transform_indices = @transform_5, window_bounds = array<i64: 16, 16>}, {pipeline_mode = #tpu.pipeline_mode<synchronous>, transform_indices = @transform_6, window_bounds = array<i64: 8, 128>}, {transform_indices = @transform_7, window_bounds = array<i64: 1, 2, 128>}, {transform_indices = @transform_8, window_bounds = array<i64: 1, 2, 128>}, {transform_indices = @transform_9, window_bounds = array<i64: 1, 8, 128>}, {transform_indices = @transform_10, window_bounds = array<i64: 1, 8, 128>}]} {
    %c0_i32 = arith.constant 0 : i32
    %0 = arith.cmpi eq, %arg1, %c0_i32 : i32
    %1 = arith.extui %0 : i1 to i32
    %c0_i32_0 = arith.constant 0 : i32
    %2 = arith.cmpi ne, %1, %c0_i32_0 : i32
    scf.if %2 {
      %c0_118 = arith.constant 0 : index
      %c0_119 = arith.constant 0 : index
      %280 = vector.load %arg8[%c0_118, %c0_119] : memref<8x128xbf16, #tpu.memory_space<vmem>>, vector<8x128xbf16>
      %c0_120 = arith.constant 0 : index
      %c0_121 = arith.constant 0 : index
      %c0_122 = arith.constant 0 : index
      %281 = vector.load %arg2[%c0_120, %c0_121, %c0_122] : memref<1x32x8xbf16, #tpu.memory_space<vmem>>, vector<1x32x8xbf16>
      %282 = vector.shape_cast %281 : vector<1x32x8xbf16> to vector<32x8xbf16>
      %cst_123 = arith.constant dense<0.000000e+00> : vector<32x128xf32>
      %283 = tpu.matmul %282, %280, %cst_123 {dimension_numbers = #tpu.dot_dimension_numbers<[1], [0], [0], [1], [0, 0, 1, 1], [], []>} : vector<32x8xbf16>, vector<8x128xbf16>, vector<32x128xf32> -> vector<32x128xf32>
      %284 = arith.truncf %283 : vector<32x128xf32> to vector<32x128xbf16>
      %c0_124 = arith.constant 0 : index
      %c0_125 = arith.constant 0 : index
      %285 = vector.load %arg13[%c0_124, %c0_125] : memref<32x128xbf16, #tpu.memory_space<vmem>>, vector<32x128xbf16>
      tpu.vector_store %arg13[%c0_124, %c0_125], %284 {strides = array<i32>} : memref<32x128xbf16, #tpu.memory_space<vmem>>, vector<32x128xbf16>,
      %c0_126 = arith.constant 0 : index
      %c0_127 = arith.constant 0 : index
      %c0_128 = arith.constant 0 : index
      %286 = vector.load %arg3[%c0_126, %c0_127, %c0_128] : memref<1x128x8xbf16, #tpu.memory_space<vmem>>, vector<1x128x8xbf16>
      %287 = vector.shape_cast %286 : vector<1x128x8xbf16> to vector<128x8xbf16>
      %cst_129 = arith.constant dense<0.000000e+00> : vector<128x128xf32>
      %288 = tpu.matmul %287, %280, %cst_129 {dimension_numbers = #tpu.dot_dimension_numbers<[1], [0], [0], [1], [0, 0, 1, 1], [], []>} : vector<128x8xbf16>, vector<8x128xbf16>, vector<128x128xf32> -> vector<128x128xf32>
      %289 = arith.truncf %288 : vector<128x128xf32> to vector<128x128xbf16>
      %c0_130 = arith.constant 0 : index
      %c0_131 = arith.constant 0 : index
      %290 = vector.load %arg14[%c0_130, %c0_131] : memref<128x128xbf16, #tpu.memory_space<vmem>>, vector<128x128xbf16>
      tpu.vector_store %arg14[%c0_130, %c0_131], %289 {strides = array<i32>} : memref<128x128xbf16, #tpu.memory_space<vmem>>, vector<128x128xbf16>,
      %cst_132 = arith.constant dense<0xFF800000> : vector<128xf32>
      %291 = vector.multi_reduction <maximumf>, %288, %cst_132 [0] : vector<128x128xf32> to vector<128xf32>
      %292 = vector.shape_cast %291 : vector<128xf32> to vector<1x128xf32>
      %c0_133 = arith.constant 0 : index
      %c0_134 = arith.constant 0 : index
      %293 = vector.load %arg15[%c0_133, %c0_134] : memref<1x128xf32, #tpu.memory_space<vmem>>, vector<1x128xf32>
      tpu.vector_store %arg15[%c0_133, %c0_134], %292 {strides = array<i32>} : memref<1x128xf32, #tpu.memory_space<vmem>>, vector<1x128xf32>,
    } else {
    }
    %c0_i32_1 = arith.constant 0 : i32
    %3 = arith.cmpi eq, %arg1, %c0_i32_1 : i32
    %4 = arith.extui %3 : i1 to i32
    %c0_i32_2 = arith.constant 0 : i32
    %5 = arith.cmpi ne, %4, %c0_i32_2 : i32
    scf.if %5 {
      %cst_118 = arith.constant 0.000000e+00 : f32
      %280 = vector.broadcast %cst_118 : f32 to vector<1x2x128xf32>
      %c0_119 = arith.constant 0 : index
      %c0_120 = arith.constant 0 : index
      %c0_121 = arith.constant 0 : index
      %281 = vector.load %arg9[%c0_119, %c0_120, %c0_121] : memref<1x2x128xf32, #tpu.memory_space<vmem>>, vector<1x2x128xf32>
      tpu.vector_store %arg9[%c0_119, %c0_120, %c0_121], %280 {strides = array<i32>} : memref<1x2x128xf32, #tpu.memory_space<vmem>>, vector<1x2x128xf32>,
      %cst_122 = arith.constant 0.000000e+00 : f32
      %282 = vector.broadcast %cst_122 : f32 to vector<1x2x128xf32>
      %c0_123 = arith.constant 0 : index
      %c0_124 = arith.constant 0 : index
      %c0_125 = arith.constant 0 : index
      %283 = vector.load %arg10[%c0_123, %c0_124, %c0_125] : memref<1x2x128xf32, #tpu.memory_space<vmem>>, vector<1x2x128xf32>
      tpu.vector_store %arg10[%c0_123, %c0_124, %c0_125], %282 {strides = array<i32>} : memref<1x2x128xf32, #tpu.memory_space<vmem>>, vector<1x2x128xf32>,
      %cst_126 = arith.constant 0.000000e+00 : f32
      %284 = vector.broadcast %cst_126 : f32 to vector<1x8x128xf32>
      %c0_127 = arith.constant 0 : index
      %c0_128 = arith.constant 0 : index
      %c0_129 = arith.constant 0 : index
      %285 = vector.load %arg11[%c0_127, %c0_128, %c0_129] : memref<1x8x128xf32, #tpu.memory_space<vmem>>, vector<1x8x128xf32>
      tpu.vector_store %arg11[%c0_127, %c0_128, %c0_129], %284 {strides = array<i32>} : memref<1x8x128xf32, #tpu.memory_space<vmem>>, vector<1x8x128xf32>,
      %cst_130 = arith.constant 0.000000e+00 : f32
      %286 = vector.broadcast %cst_130 : f32 to vector<1x8x128xf32>
      %c0_131 = arith.constant 0 : index
      %c0_132 = arith.constant 0 : index
      %c0_133 = arith.constant 0 : index
      %287 = vector.load %arg12[%c0_131, %c0_132, %c0_133] : memref<1x8x128xf32, #tpu.memory_space<vmem>>, vector<1x8x128xf32>
      tpu.vector_store %arg12[%c0_131, %c0_132, %c0_133], %286 {strides = array<i32>} : memref<1x8x128xf32, #tpu.memory_space<vmem>>, vector<1x8x128xf32>,
    } else {
    }
    %c0 = arith.constant 0 : index
    %c0_3 = arith.constant 0 : index
    %6 = vector.load %arg7[%c0, %c0_3] : memref<16x16xbf16, #tpu.memory_space<vmem>>, vector<16x16xbf16>
    %c0_4 = arith.constant 0 : index
    %c0_5 = arith.constant 0 : index
    %c0_6 = arith.constant 0 : index
    %7 = vector.load %arg4[%c0_4, %c0_5, %c0_6] : memref<1x16x128xi32, #tpu.memory_space<vmem>>, vector<1x16x128xi32>
    %8 = vector.shape_cast %7 : vector<1x16x128xi32> to vector<16x128xi32>
    %c0_7 = arith.constant 0 : index
    %c0_8 = arith.constant 0 : index
    %c0_9 = arith.constant 0 : index
    %9 = vector.load %arg5[%c0_7, %c0_8, %c0_9] : memref<1x16x128xf32, #tpu.memory_space<vmem>>, vector<1x16x128xf32>
    %10 = vector.shape_cast %9 : vector<1x16x128xf32> to vector<16x128xf32>
    %c0_10 = arith.constant 0 : index
    %c0_11 = arith.constant 0 : index
    %c0_12 = arith.constant 0 : index
    %11 = vector.load %arg6[%c0_10, %c0_11, %c0_12] : memref<1x16x128xf32, #tpu.memory_space<vmem>>, vector<1x16x128xf32>
    %12 = vector.shape_cast %11 : vector<1x16x128xf32> to vector<16x128xf32>
    %c0_13 = arith.constant 0 : index
    %c0_14 = arith.constant 0 : index
    %13 = vector.load %arg13[%c0_13, %c0_14] : memref<32x128xbf16, #tpu.memory_space<vmem>>, vector<16x128xbf16>
    %cst = arith.constant dense<0.000000e+00> : vector<16x128xf32>
    %14 = tpu.matmul %6, %13, %cst {dimension_numbers = #tpu.dot_dimension_numbers<[1], [0], [0], [1], [0, 0, 1, 1], [], []>} : vector<16x16xbf16>, vector<16x128xbf16>, vector<16x128xf32> -> vector<16x128xf32>
    %c16 = arith.constant 16 : index
    %c0_15 = arith.constant 0 : index
    %15 = vector.load %arg13[%c16, %c0_15] : memref<32x128xbf16, #tpu.memory_space<vmem>>, vector<16x128xbf16>
    %cst_16 = arith.constant dense<0.000000e+00> : vector<16x128xf32>
    %16 = tpu.matmul %6, %15, %cst_16 {dimension_numbers = #tpu.dot_dimension_numbers<[1], [0], [0], [1], [0, 0, 1, 1], [], []>} : vector<16x16xbf16>, vector<16x128xbf16>, vector<16x128xf32> -> vector<16x128xf32>
    %cst_17 = arith.constant 0.000000e+00 : f32
    %17 = vector.broadcast %cst_17 : f32 to vector<16x128xf32>
    %18 = arith.cmpf oge, %10, %17 : vector<16x128xf32>
    %cst_18 = arith.constant 5.000000e+00 : f32
    %19 = vector.broadcast %cst_18 : f32 to vector<16x128xf32>
    %20 = arith.cmpf ole, %10, %19 : vector<16x128xf32>
    %21 = arith.andi %18, %20 : vector<16x128xi1>
    %c-1_i32 = arith.constant -1 : i32
    %22 = vector.broadcast %c-1_i32 : i32 to vector<16x128xi32>
    %23 = arith.cmpi eq, %8, %22 : vector<16x128xi32>
    %c1_i32 = arith.constant 1 : i32
    %c0_i32_19 = arith.constant 0 : i32
    %24 = vector.broadcast %c1_i32 : i32 to vector<16x128xi32>
    %25 = vector.broadcast %c0_i32_19 : i32 to vector<16x128xi32>
    %26 = arith.select %21, %24, %25 : vector<16x128xi1>, vector<16x128xi32>
    %c-1_i32_20 = arith.constant -1 : i32
    %27 = vector.broadcast %c-1_i32_20 : i32 to vector<16x128xi32>
    %28 = arith.select %23, %27, %26 : vector<16x128xi1>, vector<16x128xi32>
    %29 = arith.subf %16, %14 : vector<16x128xf32>
    %30 = arith.maximumf %14, %16 : vector<16x128xf32>
    %31 = math.absf %29 : vector<16x128xf32>
    %cst_21 = arith.constant 0.000000e+00 : f32
    %32 = vector.broadcast %cst_21 : f32 to vector<16x128xf32>
    %33 = arith.subf %32, %31 : vector<16x128xf32>
    %34 = math.exp %33 : vector<16x128xf32>
    %cst_22 = arith.constant 1.000000e+00 : f32
    %35 = vector.broadcast %cst_22 : f32 to vector<16x128xf32>
    %36 = arith.addf %35, %34 : vector<16x128xf32>
    %37 = math.log %36 : vector<16x128xf32>
    %38 = arith.addf %30, %37 : vector<16x128xf32>
    %c0_i32_23 = arith.constant 0 : i32
    %39 = vector.broadcast %c0_i32_23 : i32 to vector<16x128xi32>
    %40 = arith.cmpi eq, %28, %39 : vector<16x128xi32>
    %41 = arith.extui %40 : vector<16x128xi1> to vector<16x128xi32>
    %42 = arith.sitofp %41 : vector<16x128xi32> to vector<16x128xf32>
    %c1_i32_24 = arith.constant 1 : i32
    %43 = vector.broadcast %c1_i32_24 : i32 to vector<16x128xi32>
    %44 = arith.cmpi eq, %28, %43 : vector<16x128xi32>
    %45 = arith.extui %44 : vector<16x128xi1> to vector<16x128xi32>
    %46 = arith.sitofp %45 : vector<16x128xi32> to vector<16x128xf32>
    %47 = arith.subf %38, %14 : vector<16x128xf32>
    %48 = arith.mulf %42, %47 : vector<16x128xf32>
    %cst_25 = arith.constant dense<0.000000e+00> : vector<128xf32>
    %49 = vector.multi_reduction <add>, %48, %cst_25 [0] : vector<16x128xf32> to vector<128xf32>
    %50 = vector.shape_cast %49 : vector<128xf32> to vector<1x128xf32>
    %51 = arith.subf %38, %16 : vector<16x128xf32>
    %52 = arith.mulf %46, %51 : vector<16x128xf32>
    %cst_26 = arith.constant dense<0.000000e+00> : vector<128xf32>
    %53 = vector.multi_reduction <add>, %52, %cst_26 [0] : vector<16x128xf32> to vector<128xf32>
    %54 = vector.shape_cast %53 : vector<128xf32> to vector<1x128xf32>
    %55 = tpu.concatenate %50, %54 in 0 : vector<1x128xf32>, vector<1x128xf32> -> vector<2x128xf32>
    %cst_27 = arith.constant dense<0.000000e+00> : vector<128xf32>
    %56 = vector.multi_reduction <add>, %42, %cst_27 [0] : vector<16x128xf32> to vector<128xf32>
    %57 = vector.shape_cast %56 : vector<128xf32> to vector<1x128xf32>
    %cst_28 = arith.constant dense<0.000000e+00> : vector<128xf32>
    %58 = vector.multi_reduction <add>, %46, %cst_28 [0] : vector<16x128xf32> to vector<128xf32>
    %59 = vector.shape_cast %58 : vector<128xf32> to vector<1x128xf32>
    %60 = tpu.concatenate %57, %59 in 0 : vector<1x128xf32>, vector<1x128xf32> -> vector<2x128xf32>
    %c0_29 = arith.constant 0 : index
    %c0_30 = arith.constant 0 : index
    %c0_31 = arith.constant 0 : index
    %61 = vector.load %arg9[%c0_29, %c0_30, %c0_31] : memref<1x2x128xf32, #tpu.memory_space<vmem>>, vector<1x2x128xf32>
    %62 = vector.shape_cast %55 : vector<2x128xf32> to vector<1x2x128xf32>
    %63 = arith.addf %61, %62 : vector<1x2x128xf32>
    %c0_32 = arith.constant 0 : index
    %c0_33 = arith.constant 0 : index
    %c0_34 = arith.constant 0 : index
    %64 = vector.load %arg9[%c0_32, %c0_33, %c0_34] : memref<1x2x128xf32, #tpu.memory_space<vmem>>, vector<1x2x128xf32>
    tpu.vector_store %arg9[%c0_32, %c0_33, %c0_34], %63 {strides = array<i32>} : memref<1x2x128xf32, #tpu.memory_space<vmem>>, vector<1x2x128xf32>,
    %c0_35 = arith.constant 0 : index
    %c0_36 = arith.constant 0 : index
    %c0_37 = arith.constant 0 : index
    %65 = vector.load %arg10[%c0_35, %c0_36, %c0_37] : memref<1x2x128xf32, #tpu.memory_space<vmem>>, vector<1x2x128xf32>
    %66 = vector.shape_cast %60 : vector<2x128xf32> to vector<1x2x128xf32>
    %67 = arith.addf %65, %66 : vector<1x2x128xf32>
    %c0_38 = arith.constant 0 : index
    %c0_39 = arith.constant 0 : index
    %c0_40 = arith.constant 0 : index
    %68 = vector.load %arg10[%c0_38, %c0_39, %c0_40] : memref<1x2x128xf32, #tpu.memory_space<vmem>>, vector<1x2x128xf32>
    tpu.vector_store %arg10[%c0_38, %c0_39, %c0_40], %67 {strides = array<i32>} : memref<1x2x128xf32, #tpu.memory_space<vmem>>, vector<1x2x128xf32>,
    %cst_41 = arith.constant 0.000000e+00 : f32
    %69 = vector.broadcast %cst_41 : f32 to vector<16x128xf32>
    %70 = arith.cmpf ole, %29, %69 : vector<16x128xf32>
    %cst_42 = arith.constant 1.575000e+02 : f32
    %71 = vector.broadcast %cst_42 : f32 to vector<16x128xf32>
    %72 = arith.addf %12, %71 : vector<16x128xf32>
    %cst_43 = arith.constant 4.500000e+01 : f32
    %73 = vector.broadcast %cst_43 : f32 to vector<16x128xf32>
    %74 = arith.divf %72, %73 : vector<16x128xf32>
    %75 = math.ceil %74 : vector<16x128xf32>
    %76 = arith.fptosi %75 : vector<16x128xf32> to vector<16x128xi32>
    %c8_i32 = arith.constant 8 : i32
    %77 = vector.broadcast %c8_i32 : i32 to vector<16x128xi32>
    %78 = arith.cmpi sge, %76, %77 : vector<16x128xi32>
    %c8_i32_44 = arith.constant 8 : i32
    %79 = vector.broadcast %c8_i32_44 : i32 to vector<16x128xi32>
    %80 = arith.subi %76, %79 : vector<16x128xi32>
    %81 = arith.select %78, %80, %76 : vector<16x128xi1>, vector<16x128xi32>
    %c0_i32_45 = arith.constant 0 : i32
    %c7_i32 = arith.constant 7 : i32
    %82 = vector.broadcast %c0_i32_45 : i32 to vector<16x128xi32>
    %83 = arith.maxsi %82, %81 : vector<16x128xi32>
    %84 = vector.broadcast %c7_i32 : i32 to vector<16x128xi32>
    %85 = arith.minsi %84, %83 : vector<16x128xi32>
    %c-1_i32_46 = arith.constant -1 : i32
    %86 = vector.broadcast %c-1_i32_46 : i32 to vector<16x128xi32>
    %87 = arith.cmpi eq, %8, %86 : vector<16x128xi32>
    %c-1_i32_47 = arith.constant -1 : i32
    %88 = vector.broadcast %c-1_i32_47 : i32 to vector<16x128xi32>
    %89 = arith.select %87, %88, %85 : vector<16x128xi1>, vector<16x128xi32>
    %c-1_i32_48 = arith.constant -1 : i32
    %90 = vector.broadcast %c-1_i32_48 : i32 to vector<16x128xi32>
    %91 = arith.select %70, %90, %89 : vector<16x128xi1>, vector<16x128xi32>
    %c0_49 = arith.constant 0 : index
    %c0_50 = arith.constant 0 : index
    %92 = vector.load %arg15[%c0_49, %c0_50] : memref<1x128xf32, #tpu.memory_space<vmem>>, vector<1x128xf32>
    %93 = vector.shape_cast %92 : vector<1x128xf32> to vector<1x128xf32>
    %94 = vector.broadcast %93 : vector<1x128xf32> to vector<16x128xf32>
    %cst_51 = arith.constant 0.000000e+00 : f32
    %95 = vector.broadcast %cst_51 : f32 to vector<16x128xf32>
    %c0_52 = arith.constant 0 : index
    %c0_53 = arith.constant 0 : index
    %96 = vector.load %arg14[%c0_52, %c0_53] : memref<128x128xbf16, #tpu.memory_space<vmem>>, vector<16x128xbf16>
    %cst_54 = arith.constant dense<0.000000e+00> : vector<16x128xf32>
    %97 = tpu.matmul %6, %96, %cst_54 {dimension_numbers = #tpu.dot_dimension_numbers<[1], [0], [0], [1], [0, 0, 1, 1], [], []>} : vector<16x16xbf16>, vector<16x128xbf16>, vector<16x128xf32> -> vector<16x128xf32>
    %c0_i32_55 = arith.constant 0 : i32
    %98 = vector.broadcast %c0_i32_55 : i32 to vector<16x128xi32>
    %99 = arith.cmpi eq, %91, %98 : vector<16x128xi32>
    %100 = arith.extui %99 : vector<16x128xi1> to vector<16x128xi32>
    %101 = arith.sitofp %100 : vector<16x128xi32> to vector<16x128xf32>
    %102 = arith.subf %97, %94 : vector<16x128xf32>
    %103 = math.exp %102 : vector<16x128xf32>
    %104 = arith.addf %95, %103 : vector<16x128xf32>
    %cst_56 = arith.constant dense<0.000000e+00> : vector<128xf32>
    %105 = vector.multi_reduction <add>, %101, %cst_56 [0] : vector<16x128xf32> to vector<128xf32>
    %106 = vector.shape_cast %105 : vector<128xf32> to vector<1x128xf32>
    %107 = arith.mulf %101, %97 : vector<16x128xf32>
    %cst_57 = arith.constant dense<0.000000e+00> : vector<128xf32>
    %108 = vector.multi_reduction <add>, %107, %cst_57 [0] : vector<16x128xf32> to vector<128xf32>
    %109 = vector.shape_cast %108 : vector<128xf32> to vector<1x128xf32>
    %c16_58 = arith.constant 16 : index
    %c0_59 = arith.constant 0 : index
    %110 = vector.load %arg14[%c16_58, %c0_59] : memref<128x128xbf16, #tpu.memory_space<vmem>>, vector<16x128xbf16>
    %cst_60 = arith.constant dense<0.000000e+00> : vector<16x128xf32>
    %111 = tpu.matmul %6, %110, %cst_60 {dimension_numbers = #tpu.dot_dimension_numbers<[1], [0], [0], [1], [0, 0, 1, 1], [], []>} : vector<16x16xbf16>, vector<16x128xbf16>, vector<16x128xf32> -> vector<16x128xf32>
    %c1_i32_61 = arith.constant 1 : i32
    %112 = vector.broadcast %c1_i32_61 : i32 to vector<16x128xi32>
    %113 = arith.cmpi eq, %91, %112 : vector<16x128xi32>
    %114 = arith.extui %113 : vector<16x128xi1> to vector<16x128xi32>
    %115 = arith.sitofp %114 : vector<16x128xi32> to vector<16x128xf32>
    %116 = arith.subf %111, %94 : vector<16x128xf32>
    %117 = math.exp %116 : vector<16x128xf32>
    %118 = arith.addf %104, %117 : vector<16x128xf32>
    %cst_62 = arith.constant dense<0.000000e+00> : vector<128xf32>
    %119 = vector.multi_reduction <add>, %115, %cst_62 [0] : vector<16x128xf32> to vector<128xf32>
    %120 = vector.shape_cast %119 : vector<128xf32> to vector<1x128xf32>
    %121 = arith.mulf %115, %111 : vector<16x128xf32>
    %cst_63 = arith.constant dense<0.000000e+00> : vector<128xf32>
    %122 = vector.multi_reduction <add>, %121, %cst_63 [0] : vector<16x128xf32> to vector<128xf32>
    %123 = vector.shape_cast %122 : vector<128xf32> to vector<1x128xf32>
    %c32 = arith.constant 32 : index
    %c0_64 = arith.constant 0 : index
    %124 = vector.load %arg14[%c32, %c0_64] : memref<128x128xbf16, #tpu.memory_space<vmem>>, vector<16x128xbf16>
    %cst_65 = arith.constant dense<0.000000e+00> : vector<16x128xf32>
    %125 = tpu.matmul %6, %124, %cst_65 {dimension_numbers = #tpu.dot_dimension_numbers<[1], [0], [0], [1], [0, 0, 1, 1], [], []>} : vector<16x16xbf16>, vector<16x128xbf16>, vector<16x128xf32> -> vector<16x128xf32>
    %c2_i32 = arith.constant 2 : i32
    %126 = vector.broadcast %c2_i32 : i32 to vector<16x128xi32>
    %127 = arith.cmpi eq, %91, %126 : vector<16x128xi32>
    %128 = arith.extui %127 : vector<16x128xi1> to vector<16x128xi32>
    %129 = arith.sitofp %128 : vector<16x128xi32> to vector<16x128xf32>
    %130 = arith.subf %125, %94 : vector<16x128xf32>
    %131 = math.exp %130 : vector<16x128xf32>
    %132 = arith.addf %118, %131 : vector<16x128xf32>
    %cst_66 = arith.constant dense<0.000000e+00> : vector<128xf32>
    %133 = vector.multi_reduction <add>, %129, %cst_66 [0] : vector<16x128xf32> to vector<128xf32>
    %134 = vector.shape_cast %133 : vector<128xf32> to vector<1x128xf32>
    %135 = arith.mulf %129, %125 : vector<16x128xf32>
    %cst_67 = arith.constant dense<0.000000e+00> : vector<128xf32>
    %136 = vector.multi_reduction <add>, %135, %cst_67 [0] : vector<16x128xf32> to vector<128xf32>
    %137 = vector.shape_cast %136 : vector<128xf32> to vector<1x128xf32>
    %c48 = arith.constant 48 : index
    %c0_68 = arith.constant 0 : index
    %138 = vector.load %arg14[%c48, %c0_68] : memref<128x128xbf16, #tpu.memory_space<vmem>>, vector<16x128xbf16>
    %cst_69 = arith.constant dense<0.000000e+00> : vector<16x128xf32>
    %139 = tpu.matmul %6, %138, %cst_69 {dimension_numbers = #tpu.dot_dimension_numbers<[1], [0], [0], [1], [0, 0, 1, 1], [], []>} : vector<16x16xbf16>, vector<16x128xbf16>, vector<16x128xf32> -> vector<16x128xf32>
    %c3_i32 = arith.constant 3 : i32
    %140 = vector.broadcast %c3_i32 : i32 to vector<16x128xi32>
    %141 = arith.cmpi eq, %91, %140 : vector<16x128xi32>
    %142 = arith.extui %141 : vector<16x128xi1> to vector<16x128xi32>
    %143 = arith.sitofp %142 : vector<16x128xi32> to vector<16x128xf32>
    %144 = arith.subf %139, %94 : vector<16x128xf32>
    %145 = math.exp %144 : vector<16x128xf32>
    %146 = arith.addf %132, %145 : vector<16x128xf32>
    %cst_70 = arith.constant dense<0.000000e+00> : vector<128xf32>
    %147 = vector.multi_reduction <add>, %143, %cst_70 [0] : vector<16x128xf32> to vector<128xf32>
    %148 = vector.shape_cast %147 : vector<128xf32> to vector<1x128xf32>
    %149 = arith.mulf %143, %139 : vector<16x128xf32>
    %cst_71 = arith.constant dense<0.000000e+00> : vector<128xf32>
    %150 = vector.multi_reduction <add>, %149, %cst_71 [0] : vector<16x128xf32> to vector<128xf32>
    %151 = vector.shape_cast %150 : vector<128xf32> to vector<1x128xf32>
    %c64 = arith.constant 64 : index
    %c0_72 = arith.constant 0 : index
    %152 = vector.load %arg14[%c64, %c0_72] : memref<128x128xbf16, #tpu.memory_space<vmem>>, vector<16x128xbf16>
    %cst_73 = arith.constant dense<0.000000e+00> : vector<16x128xf32>
    %153 = tpu.matmul %6, %152, %cst_73 {dimension_numbers = #tpu.dot_dimension_numbers<[1], [0], [0], [1], [0, 0, 1, 1], [], []>} : vector<16x16xbf16>, vector<16x128xbf16>, vector<16x128xf32> -> vector<16x128xf32>
    %c4_i32 = arith.constant 4 : i32
    %154 = vector.broadcast %c4_i32 : i32 to vector<16x128xi32>
    %155 = arith.cmpi eq, %91, %154 : vector<16x128xi32>
    %156 = arith.extui %155 : vector<16x128xi1> to vector<16x128xi32>
    %157 = arith.sitofp %156 : vector<16x128xi32> to vector<16x128xf32>
    %158 = arith.subf %153, %94 : vector<16x128xf32>
    %159 = math.exp %158 : vector<16x128xf32>
    %160 = arith.addf %146, %159 : vector<16x128xf32>
    %cst_74 = arith.constant dense<0.000000e+00> : vector<128xf32>
    %161 = vector.multi_reduction <add>, %157, %cst_74 [0] : vector<16x128xf32> to vector<128xf32>
    %162 = vector.shape_cast %161 : vector<128xf32> to vector<1x128xf32>
    %163 = arith.mulf %157, %153 : vector<16x128xf32>
    %cst_75 = arith.constant dense<0.000000e+00> : vector<128xf32>
    %164 = vector.multi_reduction <add>, %163, %cst_75 [0] : vector<16x128xf32> to vector<128xf32>
    %165 = vector.shape_cast %164 : vector<128xf32> to vector<1x128xf32>
    %c80 = arith.constant 80 : index
    %c0_76 = arith.constant 0 : index
    %166 = vector.load %arg14[%c80, %c0_76] : memref<128x128xbf16, #tpu.memory_space<vmem>>, vector<16x128xbf16>
    %cst_77 = arith.constant dense<0.000000e+00> : vector<16x128xf32>
    %167 = tpu.matmul %6, %166, %cst_77 {dimension_numbers = #tpu.dot_dimension_numbers<[1], [0], [0], [1], [0, 0, 1, 1], [], []>} : vector<16x16xbf16>, vector<16x128xbf16>, vector<16x128xf32> -> vector<16x128xf32>
    %c5_i32 = arith.constant 5 : i32
    %168 = vector.broadcast %c5_i32 : i32 to vector<16x128xi32>
    %169 = arith.cmpi eq, %91, %168 : vector<16x128xi32>
    %170 = arith.extui %169 : vector<16x128xi1> to vector<16x128xi32>
    %171 = arith.sitofp %170 : vector<16x128xi32> to vector<16x128xf32>
    %172 = arith.subf %167, %94 : vector<16x128xf32>
    %173 = math.exp %172 : vector<16x128xf32>
    %174 = arith.addf %160, %173 : vector<16x128xf32>
    %cst_78 = arith.constant dense<0.000000e+00> : vector<128xf32>
    %175 = vector.multi_reduction <add>, %171, %cst_78 [0] : vector<16x128xf32> to vector<128xf32>
    %176 = vector.shape_cast %175 : vector<128xf32> to vector<1x128xf32>
    %177 = arith.mulf %171, %167 : vector<16x128xf32>
    %cst_79 = arith.constant dense<0.000000e+00> : vector<128xf32>
    %178 = vector.multi_reduction <add>, %177, %cst_79 [0] : vector<16x128xf32> to vector<128xf32>
    %179 = vector.shape_cast %178 : vector<128xf32> to vector<1x128xf32>
    %c96 = arith.constant 96 : index
    %c0_80 = arith.constant 0 : index
    %180 = vector.load %arg14[%c96, %c0_80] : memref<128x128xbf16, #tpu.memory_space<vmem>>, vector<16x128xbf16>
    %cst_81 = arith.constant dense<0.000000e+00> : vector<16x128xf32>
    %181 = tpu.matmul %6, %180, %cst_81 {dimension_numbers = #tpu.dot_dimension_numbers<[1], [0], [0], [1], [0, 0, 1, 1], [], []>} : vector<16x16xbf16>, vector<16x128xbf16>, vector<16x128xf32> -> vector<16x128xf32>
    %c6_i32 = arith.constant 6 : i32
    %182 = vector.broadcast %c6_i32 : i32 to vector<16x128xi32>
    %183 = arith.cmpi eq, %91, %182 : vector<16x128xi32>
    %184 = arith.extui %183 : vector<16x128xi1> to vector<16x128xi32>
    %185 = arith.sitofp %184 : vector<16x128xi32> to vector<16x128xf32>
    %186 = arith.subf %181, %94 : vector<16x128xf32>
    %187 = math.exp %186 : vector<16x128xf32>
    %188 = arith.addf %174, %187 : vector<16x128xf32>
    %cst_82 = arith.constant dense<0.000000e+00> : vector<128xf32>
    %189 = vector.multi_reduction <add>, %185, %cst_82 [0] : vector<16x128xf32> to vector<128xf32>
    %190 = vector.shape_cast %189 : vector<128xf32> to vector<1x128xf32>
    %191 = arith.mulf %185, %181 : vector<16x128xf32>
    %cst_83 = arith.constant dense<0.000000e+00> : vector<128xf32>
    %192 = vector.multi_reduction <add>, %191, %cst_83 [0] : vector<16x128xf32> to vector<128xf32>
    %193 = vector.shape_cast %192 : vector<128xf32> to vector<1x128xf32>
    %c112 = arith.constant 112 : index
    %c0_84 = arith.constant 0 : index
    %194 = vector.load %arg14[%c112, %c0_84] : memref<128x128xbf16, #tpu.memory_space<vmem>>, vector<16x128xbf16>
    %cst_85 = arith.constant dense<0.000000e+00> : vector<16x128xf32>
    %195 = tpu.matmul %6, %194, %cst_85 {dimension_numbers = #tpu.dot_dimension_numbers<[1], [0], [0], [1], [0, 0, 1, 1], [], []>} : vector<16x16xbf16>, vector<16x128xbf16>, vector<16x128xf32> -> vector<16x128xf32>
    %c7_i32_86 = arith.constant 7 : i32
    %196 = vector.broadcast %c7_i32_86 : i32 to vector<16x128xi32>
    %197 = arith.cmpi eq, %91, %196 : vector<16x128xi32>
    %198 = arith.extui %197 : vector<16x128xi1> to vector<16x128xi32>
    %199 = arith.sitofp %198 : vector<16x128xi32> to vector<16x128xf32>
    %200 = arith.subf %195, %94 : vector<16x128xf32>
    %201 = math.exp %200 : vector<16x128xf32>
    %202 = arith.addf %188, %201 : vector<16x128xf32>
    %cst_87 = arith.constant dense<0.000000e+00> : vector<128xf32>
    %203 = vector.multi_reduction <add>, %199, %cst_87 [0] : vector<16x128xf32> to vector<128xf32>
    %204 = vector.shape_cast %203 : vector<128xf32> to vector<1x128xf32>
    %205 = arith.mulf %199, %195 : vector<16x128xf32>
    %cst_88 = arith.constant dense<0.000000e+00> : vector<128xf32>
    %206 = vector.multi_reduction <add>, %205, %cst_88 [0] : vector<16x128xf32> to vector<128xf32>
    %207 = vector.shape_cast %206 : vector<128xf32> to vector<1x128xf32>
    %cst_89 = arith.constant 1.000000e-30 : f32
    %208 = vector.broadcast %cst_89 : f32 to vector<16x128xf32>
    %209 = arith.maximumf %202, %208 : vector<16x128xf32>
    %210 = math.log %209 : vector<16x128xf32>
    %211 = arith.addf %94, %210 : vector<16x128xf32>
    %c0_i32_90 = arith.constant 0 : i32
    %212 = vector.broadcast %c0_i32_90 : i32 to vector<16x128xi32>
    %213 = arith.cmpi eq, %91, %212 : vector<16x128xi32>
    %214 = arith.extui %213 : vector<16x128xi1> to vector<16x128xi32>
    %215 = arith.sitofp %214 : vector<16x128xi32> to vector<16x128xf32>
    %216 = arith.mulf %215, %211 : vector<16x128xf32>
    %cst_91 = arith.constant dense<0.000000e+00> : vector<128xf32>
    %217 = vector.multi_reduction <add>, %216, %cst_91 [0] : vector<16x128xf32> to vector<128xf32>
    %218 = vector.shape_cast %217 : vector<128xf32> to vector<1x128xf32>
    %c1_i32_92 = arith.constant 1 : i32
    %219 = vector.broadcast %c1_i32_92 : i32 to vector<16x128xi32>
    %220 = arith.cmpi eq, %91, %219 : vector<16x128xi32>
    %221 = arith.extui %220 : vector<16x128xi1> to vector<16x128xi32>
    %222 = arith.sitofp %221 : vector<16x128xi32> to vector<16x128xf32>
    %223 = arith.mulf %222, %211 : vector<16x128xf32>
    %cst_93 = arith.constant dense<0.000000e+00> : vector<128xf32>
    %224 = vector.multi_reduction <add>, %223, %cst_93 [0] : vector<16x128xf32> to vector<128xf32>
    %225 = vector.shape_cast %224 : vector<128xf32> to vector<1x128xf32>
    %c2_i32_94 = arith.constant 2 : i32
    %226 = vector.broadcast %c2_i32_94 : i32 to vector<16x128xi32>
    %227 = arith.cmpi eq, %91, %226 : vector<16x128xi32>
    %228 = arith.extui %227 : vector<16x128xi1> to vector<16x128xi32>
    %229 = arith.sitofp %228 : vector<16x128xi32> to vector<16x128xf32>
    %230 = arith.mulf %229, %211 : vector<16x128xf32>
    %cst_95 = arith.constant dense<0.000000e+00> : vector<128xf32>
    %231 = vector.multi_reduction <add>, %230, %cst_95 [0] : vector<16x128xf32> to vector<128xf32>
    %232 = vector.shape_cast %231 : vector<128xf32> to vector<1x128xf32>
    %c3_i32_96 = arith.constant 3 : i32
    %233 = vector.broadcast %c3_i32_96 : i32 to vector<16x128xi32>
    %234 = arith.cmpi eq, %91, %233 : vector<16x128xi32>
    %235 = arith.extui %234 : vector<16x128xi1> to vector<16x128xi32>
    %236 = arith.sitofp %235 : vector<16x128xi32> to vector<16x128xf32>
    %237 = arith.mulf %236, %211 : vector<16x128xf32>
    %cst_97 = arith.constant dense<0.000000e+00> : vector<128xf32>
    %238 = vector.multi_reduction <add>, %237, %cst_97 [0] : vector<16x128xf32> to vector<128xf32>
    %239 = vector.shape_cast %238 : vector<128xf32> to vector<1x128xf32>
    %c4_i32_98 = arith.constant 4 : i32
    %240 = vector.broadcast %c4_i32_98 : i32 to vector<16x128xi32>
    %241 = arith.cmpi eq, %91, %240 : vector<16x128xi32>
    %242 = arith.extui %241 : vector<16x128xi1> to vector<16x128xi32>
    %243 = arith.sitofp %242 : vector<16x128xi32> to vector<16x128xf32>
    %244 = arith.mulf %243, %211 : vector<16x128xf32>
    %cst_99 = arith.constant dense<0.000000e+00> : vector<128xf32>
    %245 = vector.multi_reduction <add>, %244, %cst_99 [0] : vector<16x128xf32> to vector<128xf32>
    %246 = vector.shape_cast %245 : vector<128xf32> to vector<1x128xf32>
    %c5_i32_100 = arith.constant 5 : i32
    %247 = vector.broadcast %c5_i32_100 : i32 to vector<16x128xi32>
    %248 = arith.cmpi eq, %91, %247 : vector<16x128xi32>
    %249 = arith.extui %248 : vector<16x128xi1> to vector<16x128xi32>
    %250 = arith.sitofp %249 : vector<16x128xi32> to vector<16x128xf32>
    %251 = arith.mulf %250, %211 : vector<16x128xf32>
    %cst_101 = arith.constant dense<0.000000e+00> : vector<128xf32>
    %252 = vector.multi_reduction <add>, %251, %cst_101 [0] : vector<16x128xf32> to vector<128xf32>
    %253 = vector.shape_cast %252 : vector<128xf32> to vector<1x128xf32>
    %c6_i32_102 = arith.constant 6 : i32
    %254 = vector.broadcast %c6_i32_102 : i32 to vector<16x128xi32>
    %255 = arith.cmpi eq, %91, %254 : vector<16x128xi32>
    %256 = arith.extui %255 : vector<16x128xi1> to vector<16x128xi32>
    %257 = arith.sitofp %256 : vector<16x128xi32> to vector<16x128xf32>
    %258 = arith.mulf %257, %211 : vector<16x128xf32>
    %cst_103 = arith.constant dense<0.000000e+00> : vector<128xf32>
    %259 = vector.multi_reduction <add>, %258, %cst_103 [0] : vector<16x128xf32> to vector<128xf32>
    %260 = vector.shape_cast %259 : vector<128xf32> to vector<1x128xf32>
    %c7_i32_104 = arith.constant 7 : i32
    %261 = vector.broadcast %c7_i32_104 : i32 to vector<16x128xi32>
    %262 = arith.cmpi eq, %91, %261 : vector<16x128xi32>
    %263 = arith.extui %262 : vector<16x128xi1> to vector<16x128xi32>
    %264 = arith.sitofp %263 : vector<16x128xi32> to vector<16x128xf32>
    %265 = arith.mulf %264, %211 : vector<16x128xf32>
    %cst_105 = arith.constant dense<0.000000e+00> : vector<128xf32>
    %266 = vector.multi_reduction <add>, %265, %cst_105 [0] : vector<16x128xf32> to vector<128xf32>
    %267 = vector.shape_cast %266 : vector<128xf32> to vector<1x128xf32>
    %268 = tpu.concatenate %218, %225, %232, %239, %246, %253, %260, %267 in 0 : vector<1x128xf32>, vector<1x128xf32>, vector<1x128xf32>, vector<1x128xf32>, vector<1x128xf32>, vector<1x128xf32>, vector<1x128xf32>, vector<1x128xf32> -> vector<8x128xf32>
    %269 = tpu.concatenate %109, %123, %137, %151, %165, %179, %193, %207 in 0 : vector<1x128xf32>, vector<1x128xf32>, vector<1x128xf32>, vector<1x128xf32>, vector<1x128xf32>, vector<1x128xf32>, vector<1x128xf32>, vector<1x128xf32> -> vector<8x128xf32>
    %270 = arith.subf %268, %269 : vector<8x128xf32>
    %271 = tpu.concatenate %106, %120, %134, %148, %162, %176, %190, %204 in 0 : vector<1x128xf32>, vector<1x128xf32>, vector<1x128xf32>, vector<1x128xf32>, vector<1x128xf32>, vector<1x128xf32>, vector<1x128xf32>, vector<1x128xf32> -> vector<8x128xf32>
    %c0_106 = arith.constant 0 : index
    %c0_107 = arith.constant 0 : index
    %c0_108 = arith.constant 0 : index
    %272 = vector.load %arg11[%c0_106, %c0_107, %c0_108] : memref<1x8x128xf32, #tpu.memory_space<vmem>>, vector<1x8x128xf32>
    %273 = vector.shape_cast %270 : vector<8x128xf32> to vector<1x8x128xf32>
    %274 = arith.addf %272, %273 : vector<1x8x128xf32>
    %c0_109 = arith.constant 0 : index
    %c0_110 = arith.constant 0 : index
    %c0_111 = arith.constant 0 : index
    %275 = vector.load %arg11[%c0_109, %c0_110, %c0_111] : memref<1x8x128xf32, #tpu.memory_space<vmem>>, vector<1x8x128xf32>
    tpu.vector_store %arg11[%c0_109, %c0_110, %c0_111], %274 {strides = array<i32>} : memref<1x8x128xf32, #tpu.memory_space<vmem>>, vector<1x8x128xf32>,
    %c0_112 = arith.constant 0 : index
    %c0_113 = arith.constant 0 : index
    %c0_114 = arith.constant 0 : index
    %276 = vector.load %arg12[%c0_112, %c0_113, %c0_114] : memref<1x8x128xf32, #tpu.memory_space<vmem>>, vector<1x8x128xf32>
    %277 = vector.shape_cast %271 : vector<8x128xf32> to vector<1x8x128xf32>
    %278 = arith.addf %276, %277 : vector<1x8x128xf32>
    %c0_115 = arith.constant 0 : index
    %c0_116 = arith.constant 0 : index
    %c0_117 = arith.constant 0 : index
    %279 = vector.load %arg12[%c0_115, %c0_116, %c0_117] : memref<1x8x128xf32, #tpu.memory_space<vmem>>, vector<1x8x128xf32>
    tpu.vector_store %arg12[%c0_115, %c0_116, %c0_117], %278 {strides = array<i32>} : memref<1x8x128xf32, #tpu.memory_space<vmem>>, vector<1x8x128xf32>,
    return
  }
  func.func @transform_0(%arg0: i32, %arg1: i32) -> (i32, i32, i32) {
    %c0_i32 = arith.constant 0 : i32
    %c0_i32_0 = arith.constant 0 : i32
    %c0_i32_1 = arith.constant 0 : i32
    return %arg0, %c0_i32, %c0_i32_0 : i32, i32, i32
  }
  func.func @transform_1(%arg0: i32, %arg1: i32) -> (i32, i32, i32) {
    %c0_i32 = arith.constant 0 : i32
    %c0_i32_0 = arith.constant 0 : i32
    %c0_i32_1 = arith.constant 0 : i32
    return %arg0, %c0_i32, %c0_i32_0 : i32, i32, i32
  }
  func.func @transform_2(%arg0: i32, %arg1: i32) -> (i32, i32, i32) {
    %c0_i32 = arith.constant 0 : i32
    %c0_i32_0 = arith.constant 0 : i32
    return %arg0, %arg1, %c0_i32 : i32, i32, i32
  }
  func.func @transform_3(%arg0: i32, %arg1: i32) -> (i32, i32, i32) {
    %c0_i32 = arith.constant 0 : i32
    %c0_i32_0 = arith.constant 0 : i32
    return %arg0, %arg1, %c0_i32 : i32, i32, i32
  }
  func.func @transform_4(%arg0: i32, %arg1: i32) -> (i32, i32, i32) {
    %c0_i32 = arith.constant 0 : i32
    %c0_i32_0 = arith.constant 0 : i32
    return %arg0, %arg1, %c0_i32 : i32, i32, i32
  }
  func.func @transform_5(%arg0: i32, %arg1: i32) -> (i32, i32) {
    %c0_i32 = arith.constant 0 : i32
    %c0_i32_0 = arith.constant 0 : i32
    return %arg1, %c0_i32 : i32, i32
  }
  func.func @transform_6(%arg0: i32, %arg1: i32) -> (i32, i32) {
    %c0_i32 = arith.constant 0 : i32
    %c0_i32_0 = arith.constant 0 : i32
    %c0_i32_1 = arith.constant 0 : i32
    return %c0_i32, %c0_i32_0 : i32, i32
  }
  func.func @transform_7(%arg0: i32, %arg1: i32) -> (i32, i32, i32) {
    %c0_i32 = arith.constant 0 : i32
    %c0_i32_0 = arith.constant 0 : i32
    %c0_i32_1 = arith.constant 0 : i32
    return %arg0, %c0_i32, %c0_i32_0 : i32, i32, i32
  }
  func.func @transform_8(%arg0: i32, %arg1: i32) -> (i32, i32, i32) {
    %c0_i32 = arith.constant 0 : i32
    %c0_i32_0 = arith.constant 0 : i32
    %c0_i32_1 = arith.constant 0 : i32
    return %arg0, %c0_i32, %c0_i32_0 : i32, i32, i32
  }
  func.func @transform_9(%arg0: i32, %arg1: i32) -> (i32, i32, i32) {
    %c0_i32 = arith.constant 0 : i32
    %c0_i32_0 = arith.constant 0 : i32
    %c0_i32_1 = arith.constant 0 : i32
    return %arg0, %c0_i32, %c0_i32_0 : i32, i32, i32
  }
  func.func @transform_10(%arg0: i32, %arg1: i32) -> (i32, i32, i32) {
    %c0_i32 = arith.constant 0 : i32
    %c0_i32_0 = arith.constant 0 : i32
    %c0_i32_1 = arith.constant 0 : i32
    return %arg0, %c0_i32, %c0_i32_0 : i32, i32, i32
  }
}

</mosaic_0001>

<llo_original>
// kernel: tpu_custom_call.1
$region0: #{tpu_custom_call.1}
  #allocation0 [shape = 'u32[]', space=smem, size = 0x4, offset = 0x4, fixed_abs, tag = 'smem constant byte address 0x4 - core index']
  #allocation1 [shape = 'u32[144,128]{1,0:T(1,128)}', space=vmem, size = 0x12000, scoped, tag = 'internal scratch']
  #allocation2 [shape = 'bf16[32,128]{1,0:T(8,128)(2,1)}', space=vmem, size = 0x2000, scoped, tag = 'scratch operand']
  #allocation3 [shape = 'bf16[128,128]{1,0:T(8,128)(2,1)}', space=vmem, size = 0x8000, scoped, tag = 'scratch operand']
  #allocation4 [shape = 'f32[1,128]{1,0:T(1,128)}', space=vmem, size = 0x200, scoped, tag = 'scratch operand']
  %s0 = inlined_call_operand.vmem [shape: bf16[2,32,8], index: 0, kind: input, shape index: {}]
  %s1 = inlined_call_operand.vmem [shape: bf16[2,128,8], index: 1, kind: input, shape index: {}]
  %s2 = inlined_call_operand.vmem [shape: s32[2,16,128], index: 2, kind: input, shape index: {}]
  %s3 = inlined_call_operand.vmem [shape: f32[2,16,128], index: 3, kind: input, shape index: {}]
  %s4 = inlined_call_operand.vmem [shape: f32[2,16,128], index: 4, kind: input, shape index: {}]
  %s5 = inlined_call_operand.vmem [shape: bf16[16,16], index: 5, kind: input, shape index: {}]
  %s6 = inlined_call_operand.vmem [shape: bf16[8,128], index: 6, kind: input, shape index: {}]
  %s7 = inlined_call_operand.hbm [shape: f32[2,2,128], index: 7, kind: output, shape index: {0}]
  %s8 = inlined_call_operand.hbm [shape: f32[2,2,128], index: 8, kind: output, shape index: {1}]
  %s9 = inlined_call_operand.hbm [shape: f32[2,8,128], index: 9, kind: output, shape index: {2}]
  %s10 = inlined_call_operand.hbm [shape: f32[2,8,128], index: 10, kind: output, shape index: {3}]
  %11 = xla_tuple %s7, %s8, %s9, %s10
  %s12 = sld [smem:[#allocation0]]
  $region89: #{tpu_custom_call.1} parent=0
    _
  %s14 = ssub.s32 1, %s12
  %s15 = scalar_select 0, %s14, %s12
  $region1: #{tpu_custom_call.1} parent=0
    #allocation5 [shape = 'u8[2048]{0}', space=vmem, size = 0x800, scoped, tag = 'output window, operand 0']
    #allocation6 [shape = 's32[2]{0}', space=sflag, size = 0x8, scoped, tag = 'scoped memory for tpu_custom_call.1']
    #allocation7 [shape = 'u8[2048]{0}', space=vmem, size = 0x800, scoped, tag = 'output window, operand 1']
    #allocation8 [shape = 's32[2]{0}', space=sflag, size = 0x8, scoped, tag = 'scoped memory for tpu_custom_call.1']
    #allocation9 [shape = 'u8[8192]{0}', space=vmem, size = 0x2000, scoped, tag = 'output window, operand 2']
    #allocation10 [shape = 'u8[8192]{0}', space=vmem, size = 0x2000, scoped, tag = 'output window, operand 3']
    #allocation11 [shape = 's32[2]{0}', space=sflag, size = 0x8, scoped, tag = 'scoped memory for tpu_custom_call.1']
    %16 = vsyncpa [#allocation6], 0
    %s17 = scalar_lea.sflag [#allocation6], 1
    %18 = vsyncpa %s17, 0
    %19 = vsyncpa [#allocation8], 0
    %s20 = scalar_lea.sflag [#allocation8], 1
    %21 = vsyncpa %s20, 0
    %22 = vsyncpa [#allocation11], 0
    %s23 = scalar_lea.sflag [#allocation11], 1
    %24 = vsyncpa %s23, 0
    loop: start=0, step=1, limit=4
    $region2: #{tpu_custom_call.1} parent=1 // loop_pre_header
      _
    $region3: #{tpu_custom_call.1} parent=1 // loop_header
      %s26 = sphi 0, %s30
      %p27 = scmp.ge.s32.totalorder %s26, 4
      %s33 = sphi 0, %s45
      %s34 = sphi 0, %s41
      %s35 = sphi 0, %s33
      %s36 = sphi 0, %s34
      %s37 = sphi 0, %s35
      %s38 = sphi 0, %s36
      %s48 = sphi 0, %s50
      %s51 = sphi 0, %s48
      %s52 = sphi 0, %s51
      %s68 = sphi 0, %s52
      %s74 = sphi 0, %s76
      %s77 = sphi 0, %s74
      %s78 = sphi 0, %s77
      %s94 = sphi 0, %s78
      %s102 = sphi 0, %s104
      %s105 = sphi 0, %s102
      %s106 = sphi 0, %s105
      %s122 = sphi 0, %s106
      %s130 = sphi 0, %s132
      %s133 = sphi 0, %s130
      %s134 = sphi 0, %s133
      %s150 = sphi 0, %s134
      %s158 = sphi 0, %s160
      %s161 = sphi 0, %s158
      %s162 = sphi 0, %s161
      %s178 = sphi 0, %s162
      %s184 = sphi 0, %s186
      %s187 = sphi 0, %s184
      %s188 = sphi 0, %s187
      %s204 = sphi 0, %s188
      %s208 = sphi 0, %s208
      %s210 = sphi 0, %s208
      %s211 = sphi 0, %s210
      %s225 = sphi 0, %s211
      %s231 = sphi 0, %s233
      %s234 = sphi 0, %s231
      %s235 = sphi 0, %s234
      %s251 = sphi 0, %s235
      %s257 = sphi 0, %s259
      %s260 = sphi 0, %s257
      %s261 = sphi 0, %s260
      %s277 = sphi 0, %s261
      %s283 = sphi 0, %s285
      %s286 = sphi 0, %s283
      %s287 = sphi 0, %s286
      %s303 = sphi 0, %s287
      %s309 = sphi 0, %s311
      %s312 = sphi 0, %s309
      %s313 = sphi 0, %s312
      %s329 = sphi 0, %s313
    $region4: #{tpu_custom_call.1} parent=1 // loop_header_branch
      %29 = sbr.rel (%p27) target = $region8
    $region5: #{tpu_custom_call.1} parent=1 // loop_body
      %s31 = ssub.s32 %s26, 1
      %s32 = ssub.s32 %s26, 2
      %s39 = sadd.s32 1, %s34
      %p40 = scmp.ge.s32.totalorder %s39, 1
      %s41 = scalar_select %p40, 0, %s39
      %s42 = sadd.s32 1, %s33
      %s43 = scalar_select %p40, %s42, %s33
      %p44 = scmp.ge.s32.totalorder %s43, 2
      %s45 = scalar_select %p44, 0, %s43
      %s46 = ssub.s32 %s33, %s45
      %p47 = scmp.eq.s32.totalorder %s46, 0
      %s49 = sadd.s32 %s48, 1
      %s50 = scalar_select %p47, %s48, %s49
      %p53 = pneg %p47
      %p54 = scmp.eq.s32.totalorder %s26, 1
      %p55 = por %p53, %p54
      %p56 = scmp.ne.s32.totalorder %s48, %s51
      %p57 = scmp.eq.s32.totalorder %s26, 0
      %p58 = por %p56, %p57
      %p59 = scmp.ne.s32.totalorder %s48, %s51
      %p60 = scmp.eq.s32.totalorder %s31, 1
      %p61 = por %p59, %p60
      %p62 = scmp.ne.s32.totalorder %s51, %s52
      %p63 = scmp.eq.s32.totalorder %s31, 0
      %p64 = por %p62, %p63
      %p65 = scmp.ne.s32.totalorder %s51, %s52
      %p66 = scmp.eq.s32.totalorder %s32, 1
      %p67 = por %p65, %p66
      %p69 = scmp.ne.s32.totalorder %s52, %s68
      %p70 = scmp.eq.s32.totalorder %s32, 0
      %p71 = por %p69, %p70
      %s72 = ssub.s32 %s33, %s45
      %p73 = scmp.eq.s32.totalorder %s72, 0
      %s75 = sadd.s32 %s74, 1
      %s76 = scalar_select %p73, %s74, %s75
      %p79 = pneg %p73
      %p80 = scmp.eq.s32.totalorder %s26, 1
      %p81 = por %p79, %p80
      %p82 = scmp.ne.s32.totalorder %s74, %s77
      %p83 = scmp.eq.s32.totalorder %s26, 0
      %p84 = por %p82, %p83
      %p85 = scmp.ne.s32.totalorder %s74, %s77
      %p86 = scmp.eq.s32.totalorder %s31, 1
      %p87 = por %p85, %p86
      %p88 = scmp.ne.s32.totalorder %s77, %s78
      %p89 = scmp.eq.s32.totalorder %s31, 0
      %p90 = por %p88, %p89
      %p91 = scmp.ne.s32.totalorder %s77, %s78
      %p92 = scmp.eq.s32.totalorder %s32, 1
      %p93 = por %p91, %p92
      %p95 = scmp.ne.s32.totalorder %s78, %s94
      %p96 = scmp.eq.s32.totalorder %s32, 0
      %p97 = por %p95, %p96
      %s98 = ssub.s32 %s33, %s45
      %s99 = ssub.s32 %s34, %s41
      %s100 = sor.u32 %s98, %s99
      %p101 = scmp.eq.s32.totalorder %s100, 0
      %s103 = sadd.s32 %s102, 1
      %s104 = scalar_select %p101, %s102, %s103
      %p107 = pneg %p101
      %p108 = scmp.eq.s32.totalorder %s26, 1
      %p109 = por %p107, %p108
      %p110 = scmp.ne.s32.totalorder %s102, %s105
      %p111 = scmp.eq.s32.totalorder %s26, 0
      %p112 = por %p110, %p111
      %p113 = scmp.ne.s32.totalorder %s102, %s105
      %p114 = scmp.eq.s32.totalorder %s31, 1
      %p115 = por %p113, %p114
      %p116 = scmp.ne.s32.totalorder %s105, %s106
      %p117 = scmp.eq.s32.totalorder %s31, 0
      %p118 = por %p116, %p117
      %p119 = scmp.ne.s32.totalorder %s105, %s106
      %p120 = scmp.eq.s32.totalorder %s32, 1
      %p121 = por %p119, %p120
      %p123 = scmp.ne.s32.totalorder %s106, %s122
      %p124 = scmp.eq.s32.totalorder %s32, 0
      %p125 = por %p123, %p124
      %s126 = ssub.s32 %s33, %s45
      %s127 = ssub.s32 %s34, %s41
      %s128 = sor.u32 %s126, %s127
      %p129 = scmp.eq.s32.totalorder %s128, 0
      %s131 = sadd.s32 %s130, 1
      %s132 = scalar_select %p129, %s130, %s131
      %p135 = pneg %p129
      %p136 = scmp.eq.s32.totalorder %s26, 1
      %p137 = por %p135, %p136
      %p138 = scmp.ne.s32.totalorder %s130, %s133
      %p139 = scmp.eq.s32.totalorder %s26, 0
      %p140 = por %p138, %p139
      %p141 = scmp.ne.s32.totalorder %s130, %s133
      %p142 = scmp.eq.s32.totalorder %s31, 1
      %p143 = por %p141, %p142
      %p144 = scmp.ne.s32.totalorder %s133, %s134
      %p145 = scmp.eq.s32.totalorder %s31, 0
      %p146 = por %p144, %p145
      %p147 = scmp.ne.s32.totalorder %s133, %s134
      %p148 = scmp.eq.s32.totalorder %s32, 1
      %p149 = por %p147, %p148
      %p151 = scmp.ne.s32.totalorder %s134, %s150
      %p152 = scmp.eq.s32.totalorder %s32, 0
      %p153 = por %p151, %p152
      %s154 = ssub.s32 %s33, %s45
      %s155 = ssub.s32 %s34, %s41
      %s156 = sor.u32 %s154, %s155
      %p157 = scmp.eq.s32.totalorder %s156, 0
      %s159 = sadd.s32 %s158, 1
      %s160 = scalar_select %p157, %s158, %s159
      %p163 = pneg %p157
      %p164 = scmp.eq.s32.totalorder %s26, 1
      %p165 = por %p163, %p164
      %p166 = scmp.ne.s32.totalorder %s158, %s161
      %p167 = scmp.eq.s32.totalorder %s26, 0
      %p168 = por %p166, %p167
      %p169 = scmp.ne.s32.totalorder %s158, %s161
      %p170 = scmp.eq.s32.totalorder %s31, 1
      %p171 = por %p169, %p170
      %p172 = scmp.ne.s32.totalorder %s161, %s162
      %p173 = scmp.eq.s32.totalorder %s31, 0
      %p174 = por %p172, %p173
      %p175 = scmp.ne.s32.totalorder %s161, %s162
      %p176 = scmp.eq.s32.totalorder %s32, 1
      %p177 = por %p175, %p176
      %p179 = scmp.ne.s32.totalorder %s162, %s178
      %p180 = scmp.eq.s32.totalorder %s32, 0
      %p181 = por %p179, %p180
      %s182 = ssub.s32 %s34, %s41
      %p183 = scmp.eq.s32.totalorder %s182, 0
      %s185 = sadd.s32 %s184, 1
      %s186 = scalar_select %p183, %s184, %s185
      %p189 = pneg %p183
      %p190 = scmp.eq.s32.totalorder %s26, 1
      %p191 = por %p189, %p190
      %p192 = scmp.ne.s32.totalorder %s184, %s187
      %p193 = scmp.eq.s32.totalorder %s26, 0
      %p194 = por %p192, %p193
      %p195 = scmp.ne.s32.totalorder %s184, %s187
      %p196 = scmp.eq.s32.totalorder %s31, 1
      %p197 = por %p195, %p196
      %p198 = scmp.ne.s32.totalorder %s187, %s188
      %p199 = scmp.eq.s32.totalorder %s31, 0
      %p200 = por %p198, %p199
      %p201 = scmp.ne.s32.totalorder %s187, %s188
      %p202 = scmp.eq.s32.totalorder %s32, 1
      %p203 = por %p201, %p202
      %p205 = scmp.ne.s32.totalorder %s188, %s204
      %p206 = scmp.eq.s32.totalorder %s32, 0
      %p207 = por %p205, %p206
      %s209 = sadd.s32 %s208, 1
      %p212 = scmp.eq.s32.totalorder %s26, 1
      %p213 = scmp.ne.s32.totalorder %s208, %s210
      %p214 = scmp.eq.s32.totalorder %s26, 0
      %p215 = por %p213, %p214
      %p216 = scmp.ne.s32.totalorder %s208, %s210
      %p217 = scmp.eq.s32.totalorder %s31, 1
      %p218 = por %p216, %p217
      %p219 = scmp.ne.s32.totalorder %s210, %s211
      %p220 = scmp.eq.s32.totalorder %s31, 0
      %p221 = por %p219, %p220
      %p222 = scmp.ne.s32.totalorder %s210, %s211
      %p223 = scmp.eq.s32.totalorder %s32, 1
      %p224 = por %p222, %p223
      %p226 = scmp.ne.s32.totalorder %s211, %s225
      %p227 = scmp.eq.s32.totalorder %s32, 0
      %p228 = por %p226, %p227
      %s229 = ssub.s32 %s33, %s45
      %p230 = scmp.eq.s32.totalorder %s229, 0
      %s232 = sadd.s32 %s231, 1
      %s233 = scalar_select %p230, %s231, %s232
      %p236 = pneg %p230
      %p237 = scmp.eq.s32.totalorder %s26, 1
      %p238 = por %p236, %p237
      %p239 = scmp.ne.s32.totalorder %s231, %s234
      %p240 = scmp.eq.s32.totalorder %s26, 0
      %p241 = por %p239, %p240
      %p242 = scmp.ne.s32.totalorder %s231, %s234
      %p243 = scmp.eq.s32.totalorder %s31, 1
      %p244 = por %p242, %p243
      %p245 = scmp.ne.s32.totalorder %s234, %s235
      %p246 = scmp.eq.s32.totalorder %s31, 0
      %p247 = por %p245, %p246
      %p248 = scmp.ne.s32.totalorder %s234, %s235
      %p249 = scmp.eq.s32.totalorder %s32, 1
      %p250 = por %p248, %p249
      %p252 = scmp.ne.s32.totalorder %s235, %s251
      %p253 = scmp.eq.s32.totalorder %s32, 0
      %p254 = por %p252, %p253
      %s255 = ssub.s32 %s33, %s45
      %p256 = scmp.eq.s32.totalorder %s255, 0
      %s258 = sadd.s32 %s257, 1
      %s259 = scalar_select %p256, %s257, %s258
      %p262 = pneg %p256
      %p263 = scmp.eq.s32.totalorder %s26, 1
      %p264 = por %p262, %p263
      %p265 = scmp.ne.s32.totalorder %s257, %s260
      %p266 = scmp.eq.s32.totalorder %s26, 0
      %p267 = por %p265, %p266
      %p268 = scmp.ne.s32.totalorder %s257, %s260
      %p269 = scmp.eq.s32.totalorder %s31, 1
      %p270 = por %p268, %p269
      %p271 = scmp.ne.s32.totalorder %s260, %s261
      %p272 = scmp.eq.s32.totalorder %s31, 0
      %p273 = por %p271, %p272
      %p274 = scmp.ne.s32.totalorder %s260, %s261
      %p275 = scmp.eq.s32.totalorder %s32, 1
      %p276 = por %p274, %p275
      %p278 = scmp.ne.s32.totalorder %s261, %s277
      %p279 = scmp.eq.s32.totalorder %s32, 0
      %p280 = por %p278, %p279
      %s281 = ssub.s32 %s33, %s45
      %p282 = scmp.eq.s32.totalorder %s281, 0
      %s284 = sadd.s32 %s283, 1
      %s285 = scalar_select %p282, %s283, %s284
      %p288 = pneg %p282
      %p289 = scmp.eq.s32.totalorder %s26, 1
      %p290 = por %p288, %p289
      %p291 = scmp.ne.s32.totalorder %s283, %s286
      %p292 = scmp.eq.s32.totalorder %s26, 0
      %p293 = por %p291, %p292
      %p294 = scmp.ne.s32.totalorder %s283, %s286
      %p295 = scmp.eq.s32.totalorder %s31, 1
      %p296 = por %p294, %p295
      %p297 = scmp.ne.s32.totalorder %s286, %s287
      %p298 = scmp.eq.s32.totalorder %s31, 0
      %p299 = por %p297, %p298
      %p300 = scmp.ne.s32.totalorder %s286, %s287
      %p301 = scmp.eq.s32.totalorder %s32, 1
      %p302 = por %p300, %p301
      %p304 = scmp.ne.s32.totalorder %s287, %s303
      %p305 = scmp.eq.s32.totalorder %s32, 0
      %p306 = por %p304, %p305
      %s307 = ssub.s32 %s33, %s45
      %p308 = scmp.eq.s32.totalorder %s307, 0
      %s310 = sadd.s32 %s309, 1
      %s311 = scalar_select %p308, %s309, %s310
      %p314 = pneg %p308
      %p315 = scmp.eq.s32.totalorder %s26, 1
      %p316 = por %p314, %p315
      %p317 = scmp.ne.s32.totalorder %s309, %s312
      %p318 = scmp.eq.s32.totalorder %s26, 0
      %p319 = por %p317, %p318
      %p320 = scmp.ne.s32.totalorder %s309, %s312
      %p321 = scmp.eq.s32.totalorder %s31, 1
      %p322 = por %p320, %p321
      %p323 = scmp.ne.s32.totalorder %s312, %s313
      %p324 = scmp.eq.s32.totalorder %s31, 0
      %p325 = por %p323, %p324
      %p326 = scmp.ne.s32.totalorder %s312, %s313
      %p327 = scmp.eq.s32.totalorder %s32, 1
      %p328 = por %p326, %p327
      %p330 = scmp.ne.s32.totalorder %s313, %s329
      %p331 = scmp.eq.s32.totalorder %s32, 0
      %p332 = por %p330, %p331
      %p333 = scmp.le.s32.totalorder 1, %s26
      %p334 = scmp.lt.s32.totalorder %s26, 3
      %p335 = pnand %p333, %p334
      %p336 = pneg %p335
      // Predicated region
      $region9: #{tpu_custom_call.1} parent=5 // pred_check
        _
      $region10: #{tpu_custom_call.1} parent=5 // pred_check_branch
        %338 = sbr.rel (%p335) target = $region12
      $region11: #{tpu_custom_call.1} parent=5 // pred_region
        %s339 = ssub.s32 %s26, 1
        // Predicated region
        $region13: #{tpu_custom_call.1} parent=11 // pred_check
          %p340 = pneg %p200
        $region14: #{tpu_custom_call.1} parent=11 // pred_check_branch
          %342 = sbr.rel (%p340) target = $region16
        $region15: #{tpu_custom_call.1} parent=11 // pred_region
          %s343 = smul.u32 2, %s36
          %p344 = scmp.lt.s32.totalorder %s343, 1
          %s345 = scalar_select %p344, %s343, 1
          %s346 = smul.addr %s345, 4
          %s347 = scalar_lea.vmem %s5, %s346
          %s348 = smul.u32 2, %s36
        $region16: #{tpu_custom_call.1} parent=11 // pred_fallthru
          _
        // Predicated region
        $region17: #{tpu_custom_call.1} parent=11 // pred_check
          %p349 = pneg %p221
        $region18: #{tpu_custom_call.1} parent=11 // pred_check_branch
          %351 = sbr.rel (%p349) target = $region20
        $region19: #{tpu_custom_call.1} parent=11 // pred_region
          _
        $region20: #{tpu_custom_call.1} parent=11 // pred_fallthru
          _
      $region12: #{tpu_custom_call.1} parent=5 // pred_fallthru
        _
      %p352 = scmp.lt.s32.totalorder %s26, 2
      // Predicated region
      $region21: #{tpu_custom_call.1} parent=5 // pred_check
        %p353 = pneg %p352
      $region22: #{tpu_custom_call.1} parent=5 // pred_check_branch
        %355 = sbr.rel (%p353) target = $region24
      $region23: #{tpu_custom_call.1} parent=5 // pred_region
        // Predicated region
        $region25: #{tpu_custom_call.1} parent=23 // pred_check
          %p356 = pneg %p58
        $region26: #{tpu_custom_call.1} parent=23 // pred_check_branch
          %358 = sbr.rel (%p356) target = $region28
        $region27: #{tpu_custom_call.1} parent=23 // pred_region
          %p359 = scmp.lt.s32.totalorder %s33, 1
          %s360 = scalar_select %p359, %s33, 1
          %s361 = smul.addr %s360, 4
          %s362 = smul.addr %s361, 4
          %s363 = scalar_lea.vmem %s0, %s362
        $region28: #{tpu_custom_call.1} parent=23 // pred_fallthru
          _
        // Predicated region
        $region29: #{tpu_custom_call.1} parent=23 // pred_check
          %p364 = pneg %p84
        $region30: #{tpu_custom_call.1} parent=23 // pred_check_branch
          %366 = sbr.rel (%p364) target = $region32
        $region31: #{tpu_custom_call.1} parent=23 // pred_region
          %p367 = scmp.lt.s32.totalorder %s33, 1
          %s368 = scalar_select %p367, %s33, 1
          %s369 = smul.addr %s368, 16
          %s370 = smul.addr %s369, 4
          %s371 = scalar_lea.vmem %s1, %s370
        $region32: #{tpu_custom_call.1} parent=23 // pred_fallthru
          _
        // Predicated region
        $region33: #{tpu_custom_call.1} parent=23 // pred_check
          %p372 = pneg %p112
        $region34: #{tpu_custom_call.1} parent=23 // pred_check_branch
          %374 = sbr.rel (%p372) target = $region36
        $region35: #{tpu_custom_call.1} parent=23 // pred_region
          %s375 = smul.u32 2, %s34
          %p376 = scmp.lt.s32.totalorder %s33, 1
          %s377 = scalar_select %p376, %s33, 1
          %p378 = scmp.lt.s32.totalorder %s375, 1
          %s379 = scalar_select %p378, %s375, 1
          %s380 = smul.addr %s377, 2
          %s381 = sadd.s32 %s379, %s380
          %s382 = smul.addr %s381, 8
          %s383 = scalar_lea.vmem %s2, %s382
          %s384 = smul.u32 2, %s34
        $region36: #{tpu_custom_call.1} parent=23 // pred_fallthru
          _
        // Predicated region
        $region37: #{tpu_custom_call.1} parent=23 // pred_check
          %p385 = pneg %p140
        $region38: #{tpu_custom_call.1} parent=23 // pred_check_branch
          %387 = sbr.rel (%p385) target = $region40
        $region39: #{tpu_custom_call.1} parent=23 // pred_region
          %s388 = smul.u32 2, %s34
          %p389 = scmp.lt.s32.totalorder %s33, 1
          %s390 = scalar_select %p389, %s33, 1
          %p391 = scmp.lt.s32.totalorder %s388, 1
          %s392 = scalar_select %p391, %s388, 1
          %s393 = smul.addr %s390, 2
          %s394 = sadd.s32 %s392, %s393
          %s395 = smul.addr %s394, 8
          %s396 = scalar_lea.vmem %s3, %s395
          %s397 = smul.u32 2, %s34
        $region40: #{tpu_custom_call.1} parent=23 // pred_fallthru
          _
        // Predicated region
        $region41: #{tpu_custom_call.1} parent=23 // pred_check
          %p398 = pneg %p168
        $region42: #{tpu_custom_call.1} parent=23 // pred_check_branch
          %400 = sbr.rel (%p398) target = $region44
        $region43: #{tpu_custom_call.1} parent=23 // pred_region
          %s401 = smul.u32 2, %s34
          %p402 = scmp.lt.s32.totalorder %s33, 1
          %s403 = scalar_select %p402, %s33, 1
          %p404 = scmp.lt.s32.totalorder %s401, 1
          %s405 = scalar_select %p404, %s401, 1
          %s406 = smul.addr %s403, 2
          %s407 = sadd.s32 %s405, %s406
          %s408 = smul.addr %s407, 8
          %s409 = scalar_lea.vmem %s4, %s408
          %s410 = smul.u32 2, %s34
        $region44: #{tpu_custom_call.1} parent=23 // pred_fallthru
          _
      $region24: #{tpu_custom_call.1} parent=5 // pred_fallthru
        _
      %p411 = scmp.le.s32.totalorder 1, %s26
      %p412 = scmp.lt.s32.totalorder %s26, 3
      %p413 = pnand %p411, %p412
      %p414 = pneg %p413
      // Predicated region
      $region45: #{tpu_custom_call.1} parent=5 // pred_check
        _
      $region46: #{tpu_custom_call.1} parent=5 // pred_check_branch
        %416 = sbr.rel (%p413) target = $region48
      $region47: #{tpu_custom_call.1} parent=5 // pred_region
        %s417 = ssub.s32 %s26, 1
        %p418 = scmp.lt.s32.totalorder %s35, 1
        %s419 = scalar_select %p418, %s35, 1
        %s420 = smul.addr %s419, 4
        %s421 = smul.addr %s420, 4
        %s422 = scalar_lea.vmem %s0, %s421
        %p423 = pneg %p64
        %p424 = pneg %p61
        %p425 = scmp.lt.s32.totalorder %s35, 1
        %s426 = scalar_select %p425, %s35, 1
        %s427 = smul.addr %s426, 16
        %s428 = smul.addr %s427, 4
        %s429 = scalar_lea.vmem %s1, %s428
        %p430 = pneg %p90
        %p431 = pneg %p87
        %s432 = smul.u32 2, %s36
        %p433 = scmp.lt.s32.totalorder %s35, 1
        %s434 = scalar_select %p433, %s35, 1
        %p435 = scmp.lt.s32.totalorder %s432, 1
        %s436 = scalar_select %p435, %s432, 1
        %s437 = smul.addr %s434, 2
        %s438 = sadd.s32 %s436, %s437
        %s439 = smul.addr %s438, 8
        %s440 = scalar_lea.vmem %s2, %s439
        %p441 = pneg %p118
        %p442 = pneg %p115
        %s443 = smul.u32 2, %s36
        %p444 = scmp.lt.s32.totalorder %s35, 1
        %s445 = scalar_select %p444, %s35, 1
        %p446 = scmp.lt.s32.totalorder %s443, 1
        %s447 = scalar_select %p446, %s443, 1
        %s448 = smul.addr %s445, 2
        %s449 = sadd.s32 %s447, %s448
        %s450 = smul.addr %s449, 8
        %s451 = scalar_lea.vmem %s3, %s450
        %p452 = pneg %p146
        %p453 = pneg %p143
        %s454 = smul.u32 2, %s36
        %p455 = scmp.lt.s32.totalorder %s35, 1
        %s456 = scalar_select %p455, %s35, 1
        %p457 = scmp.lt.s32.totalorder %s454, 1
        %s458 = scalar_select %p457, %s454, 1
        %s459 = smul.addr %s456, 2
        %s460 = sadd.s32 %s458, %s459
        %s461 = smul.addr %s460, 8
        %s462 = scalar_lea.vmem %s4, %s461
        %p463 = pneg %p174
        %p464 = pneg %p171
        %s465 = smul.u32 2, %s36
        %p466 = scmp.lt.s32.totalorder %s465, 1
        %s467 = scalar_select %p466, %s465, 1
        %s468 = smul.addr %s467, 4
        %s469 = scalar_lea.vmem %s5, %s468
        %p470 = pneg %p200
        %p471 = pneg %p197
        %p472 = pneg %p221
        %p473 = pneg %p218
        %p474 = pneg %p247
        %p475 = pneg %p244
        %s476 = sand.u32 %s234, 1
        %s477 = scalar_lea.sflag [#allocation6], %s476
        %s478 = sand.u32 %s234, 1
        %s479 = smul.addr %s478, 2
        %s480 = scalar_lea.vmem [#allocation5], %s479
        %p481 = pneg %p273
        %p482 = pneg %p270
        %s483 = sand.u32 %s31, 1
        %s484 = scalar_lea.sflag [#allocation8], %s483
        %s485 = sand.u32 %s260, 1
        %s486 = smul.addr %s485, 2
        %s487 = scalar_lea.vmem [#allocation7], %s486
        %p488 = pneg %p299
        %p489 = pneg %p296
        %s490 = sand.u32 %s31, 1
        %s491 = scalar_lea.sflag [#allocation8], %s490
        %s492 = sand.u32 %s286, 1
        %s493 = smul.addr %s492, 8
        %s494 = scalar_lea.vmem [#allocation9], %s493
        %p495 = pneg %p325
        %p496 = pneg %p322
        %s497 = sand.u32 %s312, 1
        %s498 = scalar_lea.sflag [#allocation11], %s497
        %s499 = sand.u32 %s312, 1
        %s500 = smul.addr %s499, 8
        %s501 = scalar_lea.vmem [#allocation10], %s500
        %p502 = scmp.lt.s32.totalorder %s35, 1
        %s503 = scalar_select %p502, %s35, 1
        %s504 = smul.addr %s503, 4
        %s505 = smul.addr %s504, 4
        %s506 = scalar_lea.vmem %s0, %s505
        %p507 = scmp.lt.s32.totalorder %s35, 1
        %s508 = scalar_select %p507, %s35, 1
        %s509 = smul.addr %s508, 16
        %s510 = smul.addr %s509, 4
        %s511 = scalar_lea.vmem %s1, %s510
        %s512 = smul.u32 2, %s36
        %p513 = scmp.lt.s32.totalorder %s35, 1
        %s514 = scalar_select %p513, %s35, 1
        %p515 = scmp.lt.s32.totalorder %s512, 1
        %s516 = scalar_select %p515, %s512, 1
        %s517 = smul.addr %s514, 2
        %s518 = sadd.s32 %s516, %s517
        %s519 = smul.addr %s518, 8
        %s520 = scalar_lea.vmem %s2, %s519
        %s521 = smul.u32 2, %s36
        %s522 = smul.u32 2, %s36
        %p523 = scmp.lt.s32.totalorder %s35, 1
        %s524 = scalar_select %p523, %s35, 1
        %p525 = scmp.lt.s32.totalorder %s522, 1
        %s526 = scalar_select %p525, %s522, 1
        %s527 = smul.addr %s524, 2
        %s528 = sadd.s32 %s526, %s527
        %s529 = smul.addr %s528, 8
        %s530 = scalar_lea.vmem %s3, %s529
        %s531 = smul.u32 2, %s36
        %s532 = smul.u32 2, %s36
        %p533 = scmp.lt.s32.totalorder %s35, 1
        %s534 = scalar_select %p533, %s35, 1
        %p535 = scmp.lt.s32.totalorder %s532, 1
        %s536 = scalar_select %p535, %s532, 1
        %s537 = smul.addr %s534, 2
        %s538 = sadd.s32 %s536, %s537
        %s539 = smul.addr %s538, 8
        %s540 = scalar_lea.vmem %s4, %s539
        %s541 = smul.u32 2, %s36
        %s542 = smul.u32 2, %s36
        %p543 = scmp.lt.s32.totalorder %s542, 1
        %s544 = scalar_select %p543, %s542, 1
        %s545 = smul.addr %s544, 4
        %s546 = scalar_lea.vmem %s5, %s545
        %s547 = smul.u32 2, %s36
        %p549 = scmp.eq.s32.totalorder %s36, 0
        // Predicated region
        $region49: #{tpu_custom_call.1} parent=47 // pred_check
          %p550 = pneg %p549
        $region50: #{tpu_custom_call.1} parent=47 // pred_check_branch
          %552 = sbr.rel (%p550) target = $region52
        $region51: #{tpu_custom_call.1} parent=47 // pred_region
          %v553 = vld [vmem:[%s6] sm:$0xf]
          %v554 = vld [vmem:[%s506] sm:$0xf]
          %v555 = vld [vmem:[%s506 + $0x4] sm:$0xf]
          %v556 = vld [vmem:[%s506 + $0x8] sm:$0xf]
          %v557 = vld [vmem:[%s506 + $0xc] sm:$0xf]
          %v562 = vunpack.c.l.b16 %v554
          %v563 = vunpack.c.l.b16 %v555
          %v564 = vunpack.c.l.b16 %v556
          %v565 = vunpack.c.l.b16 %v557
          %v566 = vpack.c.b16 %v563, %v562
          %v567 = vpack.c.b16 %v565, %v564
          %vm568 = vcmask 64512
          %v570 = vsel %vm568, %v566, 0
          %v573 = vsel %vm568, %v567, 0
          %vm575 = vcmask 1043456
          %v577 = vsel %vm575, %v553, 0
          %579 = vmatprep.subr.bf16.mxu0 0
          %580 = vmatpush1.bf16.msra.mxu0 0
          %581 = vmatprep.subr.bf16.mxu0 0
          %582 = vmatpush1.bf16.msra.mxu0 0
          %583 = vmatprep.subr.bf16.mxu0 0
          %584 = vmatpush1.bf16.msra.mxu0 0
          %585 = vmatprep.subr.bf16.mxu0 0
          %586 = vmatpush1.bf16.msra.mxu0 0
          %587 = vmatprep.subr.bf16.mxu0 0
          %588 = vmatpush1.bf16.msra.mxu0 0
          %589 = vmatprep.subr.bf16.mxu0 0
          %590 = vmatpush1.bf16.msra.mxu0 0
          %591 = vmatprep.subr.bf16.mxu0 0
          %592 = vmatpush1.bf16.msra.mxu0 0
          %593 = vmatprep.subr.bf16.mxu0 0
          %594 = vmatpush1.bf16.msra.mxu0 %v577
          %595 = vmatprep.subr.bf16.mxu0 0
          %596 = vmatpush2.bf16.msra.mxu0 0
          %597 = vmatprep.subr.bf16.mxu0 0
          %598 = vmatpush2.bf16.msra.mxu0 0
          %599 = vmatprep.subr.bf16.mxu0 0
          %600 = vmatpush2.bf16.msra.mxu0 0
          %601 = vmatprep.subr.bf16.mxu0 0
          %602 = vmatpush2.bf16.msra.mxu0 0
          %603 = vmatprep.subr.bf16.mxu0 0
          %604 = vmatpush2.bf16.msra.mxu0 0
          %605 = vmatprep.subr.bf16.mxu0 0
          %606 = vmatpush2.bf16.msra.mxu0 0
          %607 = vmatprep.subr.bf16.mxu0 0
          %608 = vmatpush2.bf16.msra.mxu0 0
          %609 = vmatprep.subr.bf16.mxu0 0
          %610 = vmatpush2.bf16.msra.mxu0 0
          %611 = vmatprep.mubr.bf16.mxu0 0
          %612 = vmatmul.mubr.bf16.gmra.mxu0 %v570
          %v613 = vpop.f32.mrf.mxu0
          %v614 = vadd.f32 0.0, %v613
          %v615 = vpop.f32.mrf.mxu0
          %v616 = vpop.f32.mrf.mxu0
          %v617 = vadd.f32 0.0, %v616
          %v618 = vpop.f32.mrf.mxu0
          %619 = vmatprep.mubr.bf16.mxu0 0
          %620 = vmatmul.mubr.bf16.gmra.mxu0 %v573
          %v621 = vpop.f32.mrf.mxu0
          %v622 = vadd.f32 0.0, %v621
          %v623 = vpop.f32.mrf.mxu0
          %v624 = vpop.f32.mrf.mxu0
          %v625 = vadd.f32 0.0, %v624
          %v626 = vpop.f32.mrf.mxu0
          %627 = vdwg.mxu0
          %v628 = vpack.c.bf16 %v617, %v614
          %v629 = vpack.c.bf16 %v625, %v622
          %v632 = vunpack.c.l.b16 %v628
          %v633 = vunpack.c.h.b16 %v628
          %v634 = vunpack.c.l.b16 %v629
          %v635 = vunpack.c.h.b16 %v629
          %v636 = vpack.c.b16 %v632, %v632
          %v637 = vpack.c.b16 %v633, %v633
          %v638 = vpack.c.b16 %v634, %v634
          %v639 = vpack.c.b16 %v635, %v635
          %644 = vst [vmem:[#allocation2] sm:$0xf] %v636
          %645 = vst [vmem:[#allocation2 + $0x4] sm:$0xf] %v637
          %646 = vst [vmem:[#allocation2 + $0x8] sm:$0xf] %v638
          %647 = vst [vmem:[#allocation2 + $0xc] sm:$0xf] %v639
          %v648 = vld [vmem:[%s511] sm:$0xf]
          %v649 = vld [vmem:[%s511 + $0x4] sm:$0xf]
          %v650 = vld [vmem:[%s511 + $0x8] sm:$0xf]
          %v651 = vld [vmem:[%s511 + $0xc] sm:$0xf]
          %v652 = vld [vmem:[%s511 + $0x10] sm:$0xf]
          %v653 = vld [vmem:[%s511 + $0x14] sm:$0xf]
          %v654 = vld [vmem:[%s511 + $0x18] sm:$0xf]
          %v655 = vld [vmem:[%s511 + $0x1c] sm:$0xf]
          %v656 = vld [vmem:[%s511 + $0x20] sm:$0xf]
          %v657 = vld [vmem:[%s511 + $0x24] sm:$0xf]
          %v658 = vld [vmem:[%s511 + $0x28] sm:$0xf]
          %v659 = vld [vmem:[%s511 + $0x2c] sm:$0xf]
          %v660 = vld [vmem:[%s511 + $0x30] sm:$0xf]
          %v661 = vld [vmem:[%s511 + $0x34] sm:$0xf]
          %v662 = vld [vmem:[%s511 + $0x38] sm:$0xf]
          %v663 = vld [vmem:[%s511 + $0x3c] sm:$0xf]
          %v680 = vunpack.c.l.b16 %v648
          %v681 = vunpack.c.l.b16 %v649
          %v682 = vunpack.c.l.b16 %v650
          %v683 = vunpack.c.l.b16 %v651
          %v684 = vunpack.c.l.b16 %v652
          %v685 = vunpack.c.l.b16 %v653
          %v686 = vunpack.c.l.b16 %v654
          %v687 = vunpack.c.l.b16 %v655
          %v688 = vunpack.c.l.b16 %v656
          %v689 = vunpack.c.l.b16 %v657
          %v690 = vunpack.c.l.b16 %v658
          %v691 = vunpack.c.l.b16 %v659
          %v692 = vunpack.c.l.b16 %v660
          %v693 = vunpack.c.l.b16 %v661
          %v694 = vunpack.c.l.b16 %v662
          %v695 = vunpack.c.l.b16 %v663
          %v696 = vpack.c.b16 %v681, %v680
          %v697 = vpack.c.b16 %v683, %v682
          %v698 = vpack.c.b16 %v685, %v684
          %v699 = vpack.c.b16 %v687, %v686
          %v700 = vpack.c.b16 %v689, %v688
          %v701 = vpack.c.b16 %v691, %v690
          %v702 = vpack.c.b16 %v693, %v692
          %v703 = vpack.c.b16 %v695, %v694
          %v705 = vsel %vm568, %v696, 0
          %v708 = vsel %vm568, %v697, 0
          %v711 = vsel %vm568, %v698, 0
          %v714 = vsel %vm568, %v699, 0
          %v717 = vsel %vm568, %v700, 0
          %v720 = vsel %vm568, %v701, 0
          %v723 = vsel %vm568, %v702, 0
          %v726 = vsel %vm568, %v703, 0
          %728 = vmatprep.subr.bf16.mxu0 0
          %729 = vmatpush1.bf16.msra.mxu0 0
          %730 = vmatprep.subr.bf16.mxu0 0
          %731 = vmatpush1.bf16.msra.mxu0 0
          %732 = vmatprep.subr.bf16.mxu0 0
          %733 = vmatpush1.bf16.msra.mxu0 0
          %734 = vmatprep.subr.bf16.mxu0 0
          %735 = vmatpush1.bf16.msra.mxu0 0
          %736 = vmatprep.subr.bf16.mxu0 0
          %737 = vmatpush1.bf16.msra.mxu0 0
          %738 = vmatprep.subr.bf16.mxu0 0
          %739 = vmatpush1.bf16.msra.mxu0 0
          %740 = vmatprep.subr.bf16.mxu0 0
          %741 = vmatpush1.bf16.msra.mxu0 0
          %742 = vmatprep.subr.bf16.mxu0 0
          %743 = vmatpush1.bf16.msra.mxu0 %v577
          %744 = vmatprep.subr.bf16.mxu0 0
          %745 = vmatpush2.bf16.msra.mxu0 0
          %746 = vmatprep.subr.bf16.mxu0 0
          %747 = vmatpush2.bf16.msra.mxu0 0
          %748 = vmatprep.subr.bf16.mxu0 0
          %749 = vmatpush2.bf16.msra.mxu0 0
          %750 = vmatprep.subr.bf16.mxu0 0
          %751 = vmatpush2.bf16.msra.mxu0 0
          %752 = vmatprep.subr.bf16.mxu0 0
          %753 = vmatpush2.bf16.msra.mxu0 0
          %754 = vmatprep.subr.bf16.mxu0 0
          %755 = vmatpush2.bf16.msra.mxu0 0
          %756 = vmatprep.subr.bf16.mxu0 0
          %757 = vmatpush2.bf16.msra.mxu0 0
          %758 = vmatprep.subr.bf16.mxu0 0
          %759 = vmatpush2.bf16.msra.mxu0 0
          %760 = vmatprep.mubr.bf16.mxu0 0
          %761 = vmatmul.mubr.bf16.gmra.mxu0 %v705
          %v762 = vpop.f32.mrf.mxu0
          %v763 = vadd.f32 0.0, %v762
          %v764 = vpop.f32.mrf.mxu0
          %v765 = vpop.f32.mrf.mxu0
          %v766 = vadd.f32 0.0, %v765
          %v767 = vpop.f32.mrf.mxu0
          %768 = vmatprep.mubr.bf16.mxu0 0
          %769 = vmatmul.mubr.bf16.gmra.mxu0 %v708
          %v770 = vpop.f32.mrf.mxu0
          %v771 = vadd.f32 0.0, %v770
          %v772 = vpop.f32.mrf.mxu0
          %v773 = vpop.f32.mrf.mxu0
          %v774 = vadd.f32 0.0, %v773
          %v775 = vpop.f32.mrf.mxu0
          %776 = vmatprep.mubr.bf16.mxu0 0
          %777 = vmatmul.mubr.bf16.gmra.mxu0 %v711
          %v778 = vpop.f32.mrf.mxu0
          %v779 = vadd.f32 0.0, %v778
          %v780 = vpop.f32.mrf.mxu0
          %v781 = vpop.f32.mrf.mxu0
          %v782 = vadd.f32 0.0, %v781
          %v783 = vpop.f32.mrf.mxu0
          %784 = vmatprep.mubr.bf16.mxu0 0
          %785 = vmatmul.mubr.bf16.gmra.mxu0 %v714
          %v786 = vpop.f32.mrf.mxu0
          %v787 = vadd.f32 0.0, %v786
          %v788 = vpop.f32.mrf.mxu0
          %v789 = vpop.f32.mrf.mxu0
          %v790 = vadd.f32 0.0, %v789
          %v791 = vpop.f32.mrf.mxu0
          %792 = vmatprep.mubr.bf16.mxu0 0
          %793 = vmatmul.mubr.bf16.gmra.mxu0 %v717
          %v794 = vpop.f32.mrf.mxu0
          %v795 = vadd.f32 0.0, %v794
          %v796 = vpop.f32.mrf.mxu0
          %v797 = vpop.f32.mrf.mxu0
          %v798 = vadd.f32 0.0, %v797
          %v799 = vpop.f32.mrf.mxu0
          %800 = vmatprep.mubr.bf16.mxu0 0
          %801 = vmatmul.mubr.bf16.gmra.mxu0 %v720
          %v802 = vpop.f32.mrf.mxu0
          %v803 = vadd.f32 0.0, %v802
          %v804 = vpop.f32.mrf.mxu0
          %v805 = vpop.f32.mrf.mxu0
          %v806 = vadd.f32 0.0, %v805
          %v807 = vpop.f32.mrf.mxu0
          %808 = vmatprep.mubr.bf16.mxu0 0
          %809 = vmatmul.mubr.bf16.gmra.mxu0 %v723
          %v810 = vpop.f32.mrf.mxu0
          %v811 = vadd.f32 0.0, %v810
          %v812 = vpop.f32.mrf.mxu0
          %v813 = vpop.f32.mrf.mxu0
          %v814 = vadd.f32 0.0, %v813
          %v815 = vpop.f32.mrf.mxu0
          %816 = vmatprep.mubr.bf16.mxu0 0
          %817 = vmatmul.mubr.bf16.gmra.mxu0 %v726
          %v818 = vpop.f32.mrf.mxu0
          %v819 = vadd.f32 0.0, %v818
          %v820 = vpop.f32.mrf.mxu0
          %v821 = vpop.f32.mrf.mxu0
          %v822 = vadd.f32 0.0, %v821
          %v823 = vpop.f32.mrf.mxu0
          %824 = vdwg.mxu0
          %v825 = vpack.c.bf16 %v766, %v763
          %v826 = vpack.c.bf16 %v774, %v771
          %v827 = vpack.c.bf16 %v782, %v779
          %v828 = vpack.c.bf16 %v790, %v787
          %v829 = vpack.c.bf16 %v798, %v795
          %v830 = vpack.c.bf16 %v806, %v803
          %v831 = vpack.c.bf16 %v814, %v811
          %v832 = vpack.c.bf16 %v822, %v819
          %v841 = vunpack.c.l.b16 %v825
          %v842 = vunpack.c.h.b16 %v825
          %v843 = vunpack.c.l.b16 %v826
          %v844 = vunpack.c.h.b16 %v826
          %v845 = vunpack.c.l.b16 %v827
          %v846 = vunpack.c.h.b16 %v827
          %v847 = vunpack.c.l.b16 %v828
          %v848 = vunpack.c.h.b16 %v828
          %v849 = vunpack.c.l.b16 %v829
          %v850 = vunpack.c.h.b16 %v829
          %v851 = vunpack.c.l.b16 %v830
          %v852 = vunpack.c.h.b16 %v830
          %v853 = vunpack.c.l.b16 %v831
          %v854 = vunpack.c.h.b16 %v831
          %v855 = vunpack.c.l.b16 %v832
          %v856 = vunpack.c.h.b16 %v832
          %v857 = vpack.c.b16 %v841, %v841
          %v858 = vpack.c.b16 %v842, %v842
          %v859 = vpack.c.b16 %v843, %v843
          %v860 = vpack.c.b16 %v844, %v844
          %v861 = vpack.c.b16 %v845, %v845
          %v862 = vpack.c.b16 %v846, %v846
          %v863 = vpack.c.b16 %v847, %v847
          %v864 = vpack.c.b16 %v848, %v848
          %v865 = vpack.c.b16 %v849, %v849
          %v866 = vpack.c.b16 %v850, %v850
          %v867 = vpack.c.b16 %v851, %v851
          %v868 = vpack.c.b16 %v852, %v852
          %v869 = vpack.c.b16 %v853, %v853
          %v870 = vpack.c.b16 %v854, %v854
          %v871 = vpack.c.b16 %v855, %v855
          %v872 = vpack.c.b16 %v856, %v856
          %889 = vst [vmem:[#allocation3] sm:$0xf] %v857
          %890 = vst [vmem:[#allocation3 + $0x4] sm:$0xf] %v858
          %891 = vst [vmem:[#allocation3 + $0x8] sm:$0xf] %v859
          %892 = vst [vmem:[#allocation3 + $0xc] sm:$0xf] %v860
          %893 = vst [vmem:[#allocation3 + $0x10] sm:$0xf] %v861
          %894 = vst [vmem:[#allocation3 + $0x14] sm:$0xf] %v862
          %895 = vst [vmem:[#allocation3 + $0x18] sm:$0xf] %v863
          %896 = vst [vmem:[#allocation3 + $0x1c] sm:$0xf] %v864
          %897 = vst [vmem:[#allocation3 + $0x20] sm:$0xf] %v865
          %898 = vst [vmem:[#allocation3 + $0x24] sm:$0xf] %v866
          %899 = vst [vmem:[#allocation3 + $0x28] sm:$0xf] %v867
          %900 = vst [vmem:[#allocation3 + $0x2c] sm:$0xf] %v868
          %901 = vst [vmem:[#allocation3 + $0x30] sm:$0xf] %v869
          %902 = vst [vmem:[#allocation3 + $0x34] sm:$0xf] %v870
          %903 = vst [vmem:[#allocation3 + $0x38] sm:$0xf] %v871
          %904 = vst [vmem:[#allocation3 + $0x3c] sm:$0xf] %v872
          %v905 = vmax.f32 %v763, %v779
          %v906 = vmax.f32 %v766, %v782
          %v907 = vmax.f32 %v771, %v787
          %v908 = vmax.f32 %v774, %v790
          %v909 = vmax.f32 %v905, %v795
          %v910 = vmax.f32 %v906, %v798
          %v911 = vmax.f32 %v907, %v803
          %v912 = vmax.f32 %v908, %v806
          %v913 = vmax.f32 %v909, %v811
          %v914 = vmax.f32 %v910, %v814
          %v915 = vmax.f32 %v911, %v819
          %v916 = vmax.f32 %v912, %v822
          %v917 = vmax.f32 %v913, %v914
          %v918 = vmax.f32 %v915, %v916
          %v919 = vmax.f32 %v917, %v918
          %v920 = vrot.slane %v919, 4
          %v921 = vmax.f32 %v919, %v920
          %v922 = vrot.slane %v921, 2
          %v923 = vmax.f32 %v921, %v922
          %v924 = vrot.slane %v923, 1
          %v925 = vmax.f32 %v923, %v924
          %926 = vst [vmem:[#allocation4] sm:$0x1] %v925
          %927 = vst [vmem:[%s480] sm:$0x3] 0.0
          %928 = vst [vmem:[%s487] sm:$0x3] 0.0
          %929 = vst [vmem:[%s494] sm:$0xff] 0.0
          %930 = vst [vmem:[%s501] sm:$0xff] 0.0
        $region52: #{tpu_custom_call.1} parent=47 // pred_fallthru
          _
        %v931 = vld [vmem:[%s546] sm:$0xf]
        %v932 = vld [vmem:[%s546 + $0x4] sm:$0xf]
        %v933 = vld [vmem:[%s520] sm:$0xff]
        %v934 = vld [vmem:[%s520 + $0x8] sm:$0xff]
        %v935 = vld [vmem:[%s530] sm:$0xff]
        %v936 = vld [vmem:[%s530 + $0x8] sm:$0xff]
        %v937 = vld [vmem:[%s540] sm:$0xff]
        %v938 = vld [vmem:[%s540 + $0x8] sm:$0xff]
        %v939 = vld [vmem:[#allocation2] sm:$0xf]
        %v940 = vld [vmem:[#allocation2 + $0x4] sm:$0xf]
        %v943 = vunpack.c.l.b16 %v931
        %v944 = vunpack.c.l.b16 %v932
        %v945 = vpack.c.b16 %v944, %v943
        %v948 = vunpack.c.l.b16 %v939
        %v949 = vunpack.c.l.b16 %v940
        %v950 = vpack.c.b16 %v949, %v948
        %vm952 = vcmask 130048
        %v954 = vsel %vm952, %v945, 0
        %956 = vmatprep.subr.bf16.mxu0 0
        %957 = vmatpush1.bf16.msra.mxu0 0
        %958 = vmatprep.subr.bf16.mxu0 0
        %959 = vmatpush1.bf16.msra.mxu0 0
        %960 = vmatprep.subr.bf16.mxu0 0
        %961 = vmatpush1.bf16.msra.mxu0 0
        %962 = vmatprep.subr.bf16.mxu0 0
        %963 = vmatpush1.bf16.msra.mxu0 0
        %964 = vmatprep.subr.bf16.mxu0 0
        %965 = vmatpush1.bf16.msra.mxu0 0
        %966 = vmatprep.subr.bf16.mxu0 0
        %967 = vmatpush1.bf16.msra.mxu0 0
        %968 = vmatprep.subr.bf16.mxu0 0
        %969 = vmatpush1.bf16.msra.mxu0 0
        %970 = vmatprep.subr.bf16.mxu0 0
        %971 = vmatpush1.bf16.msra.mxu0 %v950
        %972 = vmatprep.subr.bf16.mxu0 0
        %973 = vmatpush2.bf16.msra.mxu0 0
        %974 = vmatprep.subr.bf16.mxu0 0
        %975 = vmatpush2.bf16.msra.mxu0 0
        %976 = vmatprep.subr.bf16.mxu0 0
        %977 = vmatpush2.bf16.msra.mxu0 0
        %978 = vmatprep.subr.bf16.mxu0 0
        %979 = vmatpush2.bf16.msra.mxu0 0
        %980 = vmatprep.subr.bf16.mxu0 0
        %981 = vmatpush2.bf16.msra.mxu0 0
        %982 = vmatprep.subr.bf16.mxu0 0
        %983 = vmatpush2.bf16.msra.mxu0 0
        %984 = vmatprep.subr.bf16.mxu0 0
        %985 = vmatpush2.bf16.msra.mxu0 0
        %986 = vmatprep.subr.bf16.mxu0 0
        %987 = vmatpush2.bf16.msra.mxu0 0
        %988 = vmatprep.mubr.bf16.mxu0 0
        %989 = vmatmul.mubr.bf16.gmra.mxu0 %v954
        %v990 = vpop.f32.mrf.mxu0
        %v991 = vadd.f32 0.0, %v990
        %v992 = vpop.f32.mrf.mxu0
        %v993 = vpop.f32.mrf.mxu0
        %v994 = vadd.f32 0.0, %v993
        %v995 = vpop.f32.mrf.mxu0
        %996 = vdwg.mxu0
        %v997 = vld [vmem:[#allocation2 + $0x8] sm:$0xf]
        %v998 = vld [vmem:[#allocation2 + $0xc] sm:$0xf]
        %v1001 = vunpack.c.l.b16 %v997
        %v1002 = vunpack.c.l.b16 %v998
        %v1003 = vpack.c.b16 %v1002, %v1001
        %1005 = vmatprep.subr.bf16.mxu0 0
        %1006 = vmatpush1.bf16.msra.mxu0 0
        %1007 = vmatprep.subr.bf16.mxu0 0
        %1008 = vmatpush1.bf16.msra.mxu0 0
        %1009 = vmatprep.subr.bf16.mxu0 0
        %1010 = vmatpush1.bf16.msra.mxu0 0
        %1011 = vmatprep.subr.bf16.mxu0 0
        %1012 = vmatpush1.bf16.msra.mxu0 0
        %1013 = vmatprep.subr.bf16.mxu0 0
        %1014 = vmatpush1.bf16.msra.mxu0 0
        %1015 = vmatprep.subr.bf16.mxu0 0
        %1016 = vmatpush1.bf16.msra.mxu0 0
        %1017 = vmatprep.subr.bf16.mxu0 0
        %1018 = vmatpush1.bf16.msra.mxu0 0
        %1019 = vmatprep.subr.bf16.mxu0 0
        %1020 = vmatpush1.bf16.msra.mxu0 %v1003
        %1021 = vmatprep.subr.bf16.mxu0 0
        %1022 = vmatpush2.bf16.msra.mxu0 0
        %1023 = vmatprep.subr.bf16.mxu0 0
        %1024 = vmatpush2.bf16.msra.mxu0 0
        %1025 = vmatprep.subr.bf16.mxu0 0
        %1026 = vmatpush2.bf16.msra.mxu0 0
        %1027 = vmatprep.subr.bf16.mxu0 0
        %1028 = vmatpush2.bf16.msra.mxu0 0
        %1029 = vmatprep.subr.bf16.mxu0 0
        %1030 = vmatpush2.bf16.msra.mxu0 0
        %1031 = vmatprep.subr.bf16.mxu0 0
        %1032 = vmatpush2.bf16.msra.mxu0 0
        %1033 = vmatprep.subr.bf16.mxu0 0
        %1034 = vmatpush2.bf16.msra.mxu0 0
        %1035 = vmatprep.subr.bf16.mxu0 0
        %1036 = vmatpush2.bf16.msra.mxu0 0
        %1037 = vmatprep.mubr.bf16.mxu0 0
        %1038 = vmatmul.mubr.bf16.gmra.mxu0 %v954
        %v1039 = vpop.f32.mrf.mxu0
        %v1040 = vadd.f32 0.0, %v1039
        %v1041 = vpop.f32.mrf.mxu0
        %v1042 = vpop.f32.mrf.mxu0
        %v1043 = vadd.f32 0.0, %v1042
        %v1044 = vpop.f32.mrf.mxu0
        %1045 = vdwg.mxu0
        %vm1046 = vcmp.ge.f32.partialorder %v935, 0.0
        %vm1047 = vcmp.ge.f32.partialorder %v936, 0.0
        %vm1048 = vcmp.le.f32.partialorder %v935, 5.0
        %vm1049 = vcmp.le.f32.partialorder %v936, 5.0
        %vm1050 = vmand %vm1046, %vm1048
        %vm1051 = vmand %vm1047, %vm1049
        %vm1052 = vcmp.eq.s32.totalorder %v933, 4294967295
        %vm1053 = vcmp.eq.s32.totalorder %v934, 4294967295
        %v1054 = vsel %vm1050, 1, 0
        %v1055 = vsel %vm1051, 1, 0
        %v1056 = vsel %vm1052, 4294967295, %v1054
        %v1057 = vsel %vm1053, 4294967295, %v1055
        %v1058 = vsub.f32 %v1040, %v991
        %v1059 = vsub.f32 %v1043, %v994
        %v1060 = vmax.f32 %v991, %v1040
        %v1061 = vmax.f32 %v994, %v1043
        %v1062 = vand.u32 2147483647, %v1058
        %v1063 = vand.u32 2147483647, %v1059
        %v1064 = vsub.f32 0.0, %v1062
        %v1065 = vsub.f32 0.0, %v1063
        %v1066 = vmul.f32 %v1064, 1.442695
        %v1067 = vpow.pop %v1066
        %v1068 = vmul.f32 %v1065, 1.442695
        %v1069 = vpow.pop %v1068
        %v1070 = vadd.f32 %v1067, 1.0
        %v1071 = vadd.f32 %v1069, 1.0
        %v1072 = vlog2.pop %v1070
        %v1073 = vmul.f32 %v1072, 0.6931472
        %v1074 = vlog2.pop %v1071
        %v1075 = vmul.f32 %v1074, 0.6931472
        %v1076 = vadd.f32 %v1060, %v1073
        %v1077 = vadd.f32 %v1061, %v1075
        %vm1078 = vcmp.eq.s32.totalorder %v1056, 0
        %vm1079 = vcmp.eq.s32.totalorder %v1057, 0
        %v1080 = vsel %vm1078, 1, 0
        %v1081 = vsel %vm1079, 1, 0
        %v1082 = vcvt.s32.f32 %v1080
        %v1083 = vcvt.s32.f32 %v1081
        %vm1084 = vcmp.eq.s32.totalorder %v1056, 1
        %vm1085 = vcmp.eq.s32.totalorder %v1057, 1
        %v1086 = vsel %vm1084, 1, 0
        %v1087 = vsel %vm1085, 1, 0
        %v1088 = vcvt.s32.f32 %v1086
        %v1089 = vcvt.s32.f32 %v1087
        %v1090 = vsub.f32 %v1076, %v991
        %v1091 = vsub.f32 %v1077, %v994
        %v1092 = vmul.f32 %v1082, %v1090
        %v1093 = vmul.f32 %v1083, %v1091
        %v1094 = vadd.f32 %v1092, %v1093
        %v1095 = vrot.slane %v1094, 4
        %v1096 = vadd.f32 %v1094, %v1095
        %v1097 = vrot.slane %v1096, 2
        %v1098 = vadd.f32 %v1096, %v1097
        %v1099 = vrot.slane %v1098, 1
        %v1100 = vadd.f32 %v1098, %v1099
        %v1101 = vsub.f32 %v1076, %v1040
        %v1102 = vsub.f32 %v1077, %v1043
        %v1103 = vmul.f32 %v1088, %v1101
        %v1104 = vmul.f32 %v1089, %v1102
        %v1105 = vadd.f32 %v1103, %v1104
        %v1106 = vrot.slane %v1105, 4
        %v1107 = vadd.f32 %v1105, %v1106
        %v1108 = vrot.slane %v1107, 2
        %v1109 = vadd.f32 %v1107, %v1108
        %v1110 = vrot.slane %v1109, 1
        %v1111 = vadd.f32 %v1109, %v1110
        %vm1112 = vcmask 1040384
        %v1113 = vsel %vm1112, %v1100, %v1111
        %v1114 = vadd.f32 %v1082, %v1083
        %v1115 = vrot.slane %v1114, 4
        %v1116 = vadd.f32 %v1114, %v1115
        %v1117 = vrot.slane %v1116, 2
        %v1118 = vadd.f32 %v1116, %v1117
        %v1119 = vrot.slane %v1118, 1
        %v1120 = vadd.f32 %v1118, %v1119
        %v1121 = vadd.f32 %v1088, %v1089
        %v1122 = vrot.slane %v1121, 4
        %v1123 = vadd.f32 %v1121, %v1122
        %v1124 = vrot.slane %v1123, 2
        %v1125 = vadd.f32 %v1123, %v1124
        %v1126 = vrot.slane %v1125, 1
        %v1127 = vadd.f32 %v1125, %v1126
        %v1128 = vsel %vm1112, %v1120, %v1127
        %v1129 = vld [vmem:[%s480] sm:$0x3]
        %v1130 = vadd.f32 %v1129, %v1113
        %1131 = vst [vmem:[%s480] sm:$0x3] %v1130
        %v1132 = vld [vmem:[%s487] sm:$0x3]
        %v1133 = vadd.f32 %v1132, %v1128
        %1134 = vst [vmem:[%s487] sm:$0x3] %v1133
        %vm1135 = vcmp.le.f32.partialorder %v1058, 0.0
        %vm1136 = vcmp.le.f32.partialorder %v1059, 0.0
        %v1137 = vadd.f32 %v937, 157.5
        %v1138 = vadd.f32 %v938, 157.5
        %v1139 = vrcp.pop 45.0
        %v1140 = vmul.f32 %v1137, %v1139
        %v1141 = vmul.f32 %v1138, %v1139
        %v1142 = vceil.f32 %v1140
        %v1143 = vceil.f32 %v1141
        %v1144 = vcvt.f32.s32.to.zero.pseudo %v1142
        %v1145 = vcvt.f32.s32.to.zero.pseudo %v1143
        %vm1146 = vcmp.ge.s32.totalorder %v1144, 8
        %vm1147 = vcmp.ge.s32.totalorder %v1145, 8
        %v1148 = vsub.s32 %v1144, 8
        %v1149 = vsub.s32 %v1145, 8
        %v1150 = vsel %vm1146, %v1148, %v1144
        %v1151 = vsel %vm1147, %v1149, %v1145
        %vm1152 = vcmp.gt.s32.totalorder %v1150, 0
        %v1153 = vsel %vm1152, %v1150, 0
        %vm1154 = vcmp.gt.s32.totalorder %v1151, 0
        %v1155 = vsel %vm1154, %v1151, 0
        %vm1156 = vcmp.lt.s32.totalorder %v1153, 7
        %v1157 = vsel %vm1156, %v1153, 7
        %vm1158 = vcmp.lt.s32.totalorder %v1155, 7
        %v1159 = vsel %vm1158, %v1155, 7
        %v1160 = vsel %vm1052, 4294967295, %v1157
        %v1161 = vsel %vm1053, 4294967295, %v1159
        %v1162 = vsel %vm1135, 4294967295, %v1160
        %v1163 = vsel %vm1136, 4294967295, %v1161
        %v1164 = vld [vmem:[#allocation4] sm:$0x1]
        %v1166 = vlaneseq
        %v1167 = vshrl.u32 %v1166, 7
        %v1168 = vsub.s32 0, %v1167
        %v1169 = vrot.slane %v1164, %v1168
        %v1171 = vld [vmem:[#allocation3] sm:$0xf]
        %v1172 = vld [vmem:[#allocation3 + $0x4] sm:$0xf]
        %v1175 = vunpack.c.l.b16 %v1171
        %v1176 = vunpack.c.l.b16 %v1172
        %v1177 = vpack.c.b16 %v1176, %v1175
        %1179 = vmatprep.subr.bf16.mxu0 0
        %1180 = vmatpush1.bf16.msra.mxu0 0
        %1181 = vmatprep.subr.bf16.mxu0 0
        %1182 = vmatpush1.bf16.msra.mxu0 0
        %1183 = vmatprep.subr.bf16.mxu0 0
        %1184 = vmatpush1.bf16.msra.mxu0 0
        %1185 = vmatprep.subr.bf16.mxu0 0
        %1186 = vmatpush1.bf16.msra.mxu0 0
        %1187 = vmatprep.subr.bf16.mxu0 0
        %1188 = vmatpush1.bf16.msra.mxu0 0
        %1189 = vmatprep.subr.bf16.mxu0 0
        %1190 = vmatpush1.bf16.msra.mxu0 0
        %1191 = vmatprep.subr.bf16.mxu0 0
        %1192 = vmatpush1.bf16.msra.mxu0 0
        %1193 = vmatprep.subr.bf16.mxu0 0
        %1194 = vmatpush1.bf16.msra.mxu0 %v1177
        %1195 = vmatprep.subr.bf16.mxu0 0
        %1196 = vmatpush2.bf16.msra.mxu0 0
        %1197 = vmatprep.subr.bf16.mxu0 0
        %1198 = vmatpush2.bf16.msra.mxu0 0
        %1199 = vmatprep.subr.bf16.mxu0 0
        %1200 = vmatpush2.bf16.msra.mxu0 0
        %1201 = vmatprep.subr.bf16.mxu0 0
        %1202 = vmatpush2.bf16.msra.mxu0 0
        %1203 = vmatprep.subr.bf16.mxu0 0
        %1204 = vmatpush2.bf16.msra.mxu0 0
        %1205 = vmatprep.subr.bf16.mxu0 0
        %1206 = vmatpush2.bf16.msra.mxu0 0
        %1207 = vmatprep.subr.bf16.mxu0 0
        %1208 = vmatpush2.bf16.msra.mxu0 0
        %1209 = vmatprep.subr.bf16.mxu0 0
        %1210 = vmatpush2.bf16.msra.mxu0 0
        %1211 = vmatprep.mubr.bf16.mxu0 0
        %1212 = vmatmul.mubr.bf16.gmra.mxu0 %v954
        %v1213 = vpop.f32.mrf.mxu0
        %v1214 = vadd.f32 0.0, %v1213
        %v1215 = vpop.f32.mrf.mxu0
        %v1216 = vpop.f32.mrf.mxu0
        %v1217 = vadd.f32 0.0, %v1216
        %v1218 = vpop.f32.mrf.mxu0
        %1219 = vdwg.mxu0
        %vm1220 = vcmp.eq.s32.totalorder %v1162, 0
        %vm1221 = vcmp.eq.s32.totalorder %v1163, 0
        %v1222 = vsel %vm1220, 1, 0
        %v1223 = vsel %vm1221, 1, 0
        %v1224 = vcvt.s32.f32 %v1222
        %v1225 = vcvt.s32.f32 %v1223
        %v1226 = vsub.f32 %v1214, %v1169
        %v1227 = vsub.f32 %v1217, %v1169
        %v1228 = vmul.f32 %v1226, 1.442695
        %v1229 = vpow.pop %v1228
        %v1230 = vmul.f32 %v1227, 1.442695
        %v1231 = vpow.pop %v1230
        %v1232 = vadd.f32 %v1229, 0.0
        %v1233 = vadd.f32 %v1231, 0.0
        %v1234 = vadd.f32 %v1224, %v1225
        %v1235 = vrot.slane %v1234, 4
        %v1236 = vadd.f32 %v1234, %v1235
        %v1237 = vrot.slane %v1236, 2
        %v1238 = vadd.f32 %v1236, %v1237
        %v1239 = vrot.slane %v1238, 1
        %v1240 = vadd.f32 %v1238, %v1239
        %v1241 = vmul.f32 %v1224, %v1214
        %v1242 = vmul.f32 %v1225, %v1217
        %v1243 = vadd.f32 %v1241, %v1242
        %v1244 = vrot.slane %v1243, 4
        %v1245 = vadd.f32 %v1243, %v1244
        %v1246 = vrot.slane %v1245, 2
        %v1247 = vadd.f32 %v1245, %v1246
        %v1248 = vrot.slane %v1247, 1
        %v1249 = vadd.f32 %v1247, %v1248
        %v1250 = vld [vmem:[#allocation3 + $0x8] sm:$0xf]
        %v1251 = vld [vmem:[#allocation3 + $0xc] sm:$0xf]
        %v1254 = vunpack.c.l.b16 %v1250
        %v1255 = vunpack.c.l.b16 %v1251
        %v1256 = vpack.c.b16 %v1255, %v1254
        %1258 = vmatprep.subr.bf16.mxu0 0
        %1259 = vmatpush1.bf16.msra.mxu0 0
        %1260 = vmatprep.subr.bf16.mxu0 0
        %1261 = vmatpush1.bf16.msra.mxu0 0
        %1262 = vmatprep.subr.bf16.mxu0 0
        %1263 = vmatpush1.bf16.msra.mxu0 0
        %1264 = vmatprep.subr.bf16.mxu0 0
        %1265 = vmatpush1.bf16.msra.mxu0 0
        %1266 = vmatprep.subr.bf16.mxu0 0
        %1267 = vmatpush1.bf16.msra.mxu0 0
        %1268 = vmatprep.subr.bf16.mxu0 0
        %1269 = vmatpush1.bf16.msra.mxu0 0
        %1270 = vmatprep.subr.bf16.mxu0 0
        %1271 = vmatpush1.bf16.msra.mxu0 0
        %1272 = vmatprep.subr.bf16.mxu0 0
        %1273 = vmatpush1.bf16.msra.mxu0 %v1256
        %1274 = vmatprep.subr.bf16.mxu0 0
        %1275 = vmatpush2.bf16.msra.mxu0 0
        %1276 = vmatprep.subr.bf16.mxu0 0
        %1277 = vmatpush2.bf16.msra.mxu0 0
        %1278 = vmatprep.subr.bf16.mxu0 0
        %1279 = vmatpush2.bf16.msra.mxu0 0
        %1280 = vmatprep.subr.bf16.mxu0 0
        %1281 = vmatpush2.bf16.msra.mxu0 0
        %1282 = vmatprep.subr.bf16.mxu0 0
        %1283 = vmatpush2.bf16.msra.mxu0 0
        %1284 = vmatprep.subr.bf16.mxu0 0
        %1285 = vmatpush2.bf16.msra.mxu0 0
        %1286 = vmatprep.subr.bf16.mxu0 0
        %1287 = vmatpush2.bf16.msra.mxu0 0
        %1288 = vmatprep.subr.bf16.mxu0 0
        %1289 = vmatpush2.bf16.msra.mxu0 0
        %1290 = vmatprep.mubr.bf16.mxu0 0
        %1291 = vmatmul.mubr.bf16.gmra.mxu0 %v954
        %v1292 = vpop.f32.mrf.mxu0
        %v1293 = vadd.f32 0.0, %v1292
        %v1294 = vpop.f32.mrf.mxu0
        %v1295 = vpop.f32.mrf.mxu0
        %v1296 = vadd.f32 0.0, %v1295
        %v1297 = vpop.f32.mrf.mxu0
        %1298 = vdwg.mxu0
        %vm1299 = vcmp.eq.s32.totalorder %v1162, 1
        %vm1300 = vcmp.eq.s32.totalorder %v1163, 1
        %v1301 = vsel %vm1299, 1, 0
        %v1302 = vsel %vm1300, 1, 0
        %v1303 = vcvt.s32.f32 %v1301
        %v1304 = vcvt.s32.f32 %v1302
        %v1305 = vsub.f32 %v1293, %v1169
        %v1306 = vsub.f32 %v1296, %v1169
        %v1307 = vmul.f32 %v1305, 1.442695
        %v1308 = vpow.pop %v1307
        %v1309 = vmul.f32 %v1306, 1.442695
        %v1310 = vpow.pop %v1309
        %v1311 = vadd.f32 %v1232, %v1308
        %v1312 = vadd.f32 %v1233, %v1310
        %v1313 = vadd.f32 %v1303, %v1304
        %v1314 = vrot.slane %v1313, 4
        %v1315 = vadd.f32 %v1313, %v1314
        %v1316 = vrot.slane %v1315, 2
        %v1317 = vadd.f32 %v1315, %v1316
        %v1318 = vrot.slane %v1317, 1
        %v1319 = vadd.f32 %v1317, %v1318
        %v1320 = vmul.f32 %v1303, %v1293
        %v1321 = vmul.f32 %v1304, %v1296
        %v1322 = vadd.f32 %v1320, %v1321
        %v1323 = vrot.slane %v1322, 4
        %v1324 = vadd.f32 %v1322, %v1323
        %v1325 = vrot.slane %v1324, 2
        %v1326 = vadd.f32 %v1324, %v1325
        %v1327 = vrot.slane %v1326, 1
        %v1328 = vadd.f32 %v1326, %v1327
        %v1329 = vld [vmem:[#allocation3 + $0x10] sm:$0xf]
        %v1330 = vld [vmem:[#allocation3 + $0x14] sm:$0xf]
        %v1333 = vunpack.c.l.b16 %v1329
        %v1334 = vunpack.c.l.b16 %v1330
        %v1335 = vpack.c.b16 %v1334, %v1333
        %1337 = vmatprep.subr.bf16.mxu0 0
        %1338 = vmatpush1.bf16.msra.mxu0 0
        %1339 = vmatprep.subr.bf16.mxu0 0
        %1340 = vmatpush1.bf16.msra.mxu0 0
        %1341 = vmatprep.subr.bf16.mxu0 0
        %1342 = vmatpush1.bf16.msra.mxu0 0
        %1343 = vmatprep.subr.bf16.mxu0 0
        %1344 = vmatpush1.bf16.msra.mxu0 0
        %1345 = vmatprep.subr.bf16.mxu0 0
        %1346 = vmatpush1.bf16.msra.mxu0 0
        %1347 = vmatprep.subr.bf16.mxu0 0
        %1348 = vmatpush1.bf16.msra.mxu0 0
        %1349 = vmatprep.subr.bf16.mxu0 0
        %1350 = vmatpush1.bf16.msra.mxu0 0
        %1351 = vmatprep.subr.bf16.mxu0 0
        %1352 = vmatpush1.bf16.msra.mxu0 %v1335
        %1353 = vmatprep.subr.bf16.mxu0 0
        %1354 = vmatpush2.bf16.msra.mxu0 0
        %1355 = vmatprep.subr.bf16.mxu0 0
        %1356 = vmatpush2.bf16.msra.mxu0 0
        %1357 = vmatprep.subr.bf16.mxu0 0
        %1358 = vmatpush2.bf16.msra.mxu0 0
        %1359 = vmatprep.subr.bf16.mxu0 0
        %1360 = vmatpush2.bf16.msra.mxu0 0
        %1361 = vmatprep.subr.bf16.mxu0 0
        %1362 = vmatpush2.bf16.msra.mxu0 0
        %1363 = vmatprep.subr.bf16.mxu0 0
        %1364 = vmatpush2.bf16.msra.mxu0 0
        %1365 = vmatprep.subr.bf16.mxu0 0
        %1366 = vmatpush2.bf16.msra.mxu0 0
        %1367 = vmatprep.subr.bf16.mxu0 0
        %1368 = vmatpush2.bf16.msra.mxu0 0
        %1369 = vmatprep.mubr.bf16.mxu0 0
        %1370 = vmatmul.mubr.bf16.gmra.mxu0 %v954
        %v1371 = vpop.f32.mrf.mxu0
        %v1372 = vadd.f32 0.0, %v1371
        %v1373 = vpop.f32.mrf.mxu0
        %v1374 = vpop.f32.mrf.mxu0
        %v1375 = vadd.f32 0.0, %v1374
        %v1376 = vpop.f32.mrf.mxu0
        %1377 = vdwg.mxu0
        %vm1378 = vcmp.eq.s32.totalorder %v1162, 2
        %vm1379 = vcmp.eq.s32.totalorder %v1163, 2
        %v1380 = vsel %vm1378, 1, 0
        %v1381 = vsel %vm1379, 1, 0
        %v1382 = vcvt.s32.f32 %v1380
        %v1383 = vcvt.s32.f32 %v1381
        %v1384 = vsub.f32 %v1372, %v1169
        %v1385 = vsub.f32 %v1375, %v1169
        %v1386 = vmul.f32 %v1384, 1.442695
        %v1387 = vpow.pop %v1386
        %v1388 = vmul.f32 %v1385, 1.442695
        %v1389 = vpow.pop %v1388
        %v1390 = vadd.f32 %v1311, %v1387
        %v1391 = vadd.f32 %v1312, %v1389
        %v1392 = vadd.f32 %v1382, %v1383
        %v1393 = vrot.slane %v1392, 4
        %v1394 = vadd.f32 %v1392, %v1393
        %v1395 = vrot.slane %v1394, 2
        %v1396 = vadd.f32 %v1394, %v1395
        %v1397 = vrot.slane %v1396, 1
        %v1398 = vadd.f32 %v1396, %v1397
        %v1399 = vmul.f32 %v1382, %v1372
        %v1400 = vmul.f32 %v1383, %v1375
        %v1401 = vadd.f32 %v1399, %v1400
        %v1402 = vrot.slane %v1401, 4
        %v1403 = vadd.f32 %v1401, %v1402
        %v1404 = vrot.slane %v1403, 2
        %v1405 = vadd.f32 %v1403, %v1404
        %v1406 = vrot.slane %v1405, 1
        %v1407 = vadd.f32 %v1405, %v1406
        %v1408 = vld [vmem:[#allocation3 + $0x18] sm:$0xf]
        %v1409 = vld [vmem:[#allocation3 + $0x1c] sm:$0xf]
        %v1412 = vunpack.c.l.b16 %v1408
        %v1413 = vunpack.c.l.b16 %v1409
        %v1414 = vpack.c.b16 %v1413, %v1412
        %1416 = vmatprep.subr.bf16.mxu0 0
        %1417 = vmatpush1.bf16.msra.mxu0 0
        %1418 = vmatprep.subr.bf16.mxu0 0
        %1419 = vmatpush1.bf16.msra.mxu0 0
        %1420 = vmatprep.subr.bf16.mxu0 0
        %1421 = vmatpush1.bf16.msra.mxu0 0
        %1422 = vmatprep.subr.bf16.mxu0 0
        %1423 = vmatpush1.bf16.msra.mxu0 0
        %1424 = vmatprep.subr.bf16.mxu0 0
        %1425 = vmatpush1.bf16.msra.mxu0 0
        %1426 = vmatprep.subr.bf16.mxu0 0
        %1427 = vmatpush1.bf16.msra.mxu0 0
        %1428 = vmatprep.subr.bf16.mxu0 0
        %1429 = vmatpush1.bf16.msra.mxu0 0
        %1430 = vmatprep.subr.bf16.mxu0 0
        %1431 = vmatpush1.bf16.msra.mxu0 %v1414
        %1432 = vmatprep.subr.bf16.mxu0 0
        %1433 = vmatpush2.bf16.msra.mxu0 0
        %1434 = vmatprep.subr.bf16.mxu0 0
        %1435 = vmatpush2.bf16.msra.mxu0 0
        %1436 = vmatprep.subr.bf16.mxu0 0
        %1437 = vmatpush2.bf16.msra.mxu0 0
        %1438 = vmatprep.subr.bf16.mxu0 0
        %1439 = vmatpush2.bf16.msra.mxu0 0
        %1440 = vmatprep.subr.bf16.mxu0 0
        %1441 = vmatpush2.bf16.msra.mxu0 0
        %1442 = vmatprep.subr.bf16.mxu0 0
        %1443 = vmatpush2.bf16.msra.mxu0 0
        %1444 = vmatprep.subr.bf16.mxu0 0
        %1445 = vmatpush2.bf16.msra.mxu0 0
        %1446 = vmatprep.subr.bf16.mxu0 0
        %1447 = vmatpush2.bf16.msra.mxu0 0
        %1448 = vmatprep.mubr.bf16.mxu0 0
        %1449 = vmatmul.mubr.bf16.gmra.mxu0 %v954
        %v1450 = vpop.f32.mrf.mxu0
        %v1451 = vadd.f32 0.0, %v1450
        %v1452 = vpop.f32.mrf.mxu0
        %v1453 = vpop.f32.mrf.mxu0
        %v1454 = vadd.f32 0.0, %v1453
        %v1455 = vpop.f32.mrf.mxu0
        %1456 = vdwg.mxu0
        %vm1457 = vcmp.eq.s32.totalorder %v1162, 3
        %vm1458 = vcmp.eq.s32.totalorder %v1163, 3
        %v1459 = vsel %vm1457, 1, 0
        %v1460 = vsel %vm1458, 1, 0
        %v1461 = vcvt.s32.f32 %v1459
        %v1462 = vcvt.s32.f32 %v1460
        %v1463 = vsub.f32 %v1451, %v1169
        %v1464 = vsub.f32 %v1454, %v1169
        %v1465 = vmul.f32 %v1463, 1.442695
        %v1466 = vpow.pop %v1465
        %v1467 = vmul.f32 %v1464, 1.442695
        %v1468 = vpow.pop %v1467
        %v1469 = vadd.f32 %v1390, %v1466
        %v1470 = vadd.f32 %v1391, %v1468
        %v1471 = vadd.f32 %v1461, %v1462
        %v1472 = vrot.slane %v1471, 4
        %v1473 = vadd.f32 %v1471, %v1472
        %v1474 = vrot.slane %v1473, 2
        %v1475 = vadd.f32 %v1473, %v1474
        %v1476 = vrot.slane %v1475, 1
        %v1477 = vadd.f32 %v1475, %v1476
        %v1478 = vmul.f32 %v1461, %v1451
        %v1479 = vmul.f32 %v1462, %v1454
        %v1480 = vadd.f32 %v1478, %v1479
        %v1481 = vrot.slane %v1480, 4
        %v1482 = vadd.f32 %v1480, %v1481
        %v1483 = vrot.slane %v1482, 2
        %v1484 = vadd.f32 %v1482, %v1483
        %v1485 = vrot.slane %v1484, 1
        %v1486 = vadd.f32 %v1484, %v1485
        %v1487 = vld [vmem:[#allocation3 + $0x20] sm:$0xf]
        %v1488 = vld [vmem:[#allocation3 + $0x24] sm:$0xf]
        %v1491 = vunpack.c.l.b16 %v1487
        %v1492 = vunpack.c.l.b16 %v1488
        %v1493 = vpack.c.b16 %v1492, %v1491
        %1495 = vmatprep.subr.bf16.mxu0 0
        %1496 = vmatpush1.bf16.msra.mxu0 0
        %1497 = vmatprep.subr.bf16.mxu0 0
        %1498 = vmatpush1.bf16.msra.mxu0 0
        %1499 = vmatprep.subr.bf16.mxu0 0
        %1500 = vmatpush1.bf16.msra.mxu0 0
        %1501 = vmatprep.subr.bf16.mxu0 0
        %1502 = vmatpush1.bf16.msra.mxu0 0
        %1503 = vmatprep.subr.bf16.mxu0 0
        %1504 = vmatpush1.bf16.msra.mxu0 0
        %1505 = vmatprep.subr.bf16.mxu0 0
        %1506 = vmatpush1.bf16.msra.mxu0 0
        %1507 = vmatprep.subr.bf16.mxu0 0
        %1508 = vmatpush1.bf16.msra.mxu0 0
        %1509 = vmatprep.subr.bf16.mxu0 0
        %1510 = vmatpush1.bf16.msra.mxu0 %v1493
        %1511 = vmatprep.subr.bf16.mxu0 0
        %1512 = vmatpush2.bf16.msra.mxu0 0
        %1513 = vmatprep.subr.bf16.mxu0 0
        %1514 = vmatpush2.bf16.msra.mxu0 0
        %1515 = vmatprep.subr.bf16.mxu0 0
        %1516 = vmatpush2.bf16.msra.mxu0 0
        %1517 = vmatprep.subr.bf16.mxu0 0
        %1518 = vmatpush2.bf16.msra.mxu0 0
        %1519 = vmatprep.subr.bf16.mxu0 0
        %1520 = vmatpush2.bf16.msra.mxu0 0
        %1521 = vmatprep.subr.bf16.mxu0 0
        %1522 = vmatpush2.bf16.msra.mxu0 0
        %1523 = vmatprep.subr.bf16.mxu0 0
        %1524 = vmatpush2.bf16.msra.mxu0 0
        %1525 = vmatprep.subr.bf16.mxu0 0
        %1526 = vmatpush2.bf16.msra.mxu0 0
        %1527 = vmatprep.mubr.bf16.mxu0 0
        %1528 = vmatmul.mubr.bf16.gmra.mxu0 %v954
        %v1529 = vpop.f32.mrf.mxu0
        %v1530 = vadd.f32 0.0, %v1529
        %v1531 = vpop.f32.mrf.mxu0
        %v1532 = vpop.f32.mrf.mxu0
        %v1533 = vadd.f32 0.0, %v1532
        %v1534 = vpop.f32.mrf.mxu0
        %1535 = vdwg.mxu0
        %vm1536 = vcmp.eq.s32.totalorder %v1162, 4
        %vm1537 = vcmp.eq.s32.totalorder %v1163, 4
        %v1538 = vsel %vm1536, 1, 0
        %v1539 = vsel %vm1537, 1, 0
        %v1540 = vcvt.s32.f32 %v1538
        %v1541 = vcvt.s32.f32 %v1539
        %v1542 = vsub.f32 %v1530, %v1169
        %v1543 = vsub.f32 %v1533, %v1169
        %v1544 = vmul.f32 %v1542, 1.442695
        %v1545 = vpow.pop %v1544
        %v1546 = vmul.f32 %v1543, 1.442695
        %v1547 = vpow.pop %v1546
        %v1548 = vadd.f32 %v1469, %v1545
        %v1549 = vadd.f32 %v1470, %v1547
        %v1550 = vadd.f32 %v1540, %v1541
        %v1551 = vrot.slane %v1550, 4
        %v1552 = vadd.f32 %v1550, %v1551
        %v1553 = vrot.slane %v1552, 2
        %v1554 = vadd.f32 %v1552, %v1553
        %v1555 = vrot.slane %v1554, 1
        %v1556 = vadd.f32 %v1554, %v1555
        %v1557 = vmul.f32 %v1540, %v1530
        %v1558 = vmul.f32 %v1541, %v1533
        %v1559 = vadd.f32 %v1557, %v1558
        %v1560 = vrot.slane %v1559, 4
        %v1561 = vadd.f32 %v1559, %v1560
        %v1562 = vrot.slane %v1561, 2
        %v1563 = vadd.f32 %v1561, %v1562
        %v1564 = vrot.slane %v1563, 1
        %v1565 = vadd.f32 %v1563, %v1564
        %v1566 = vld [vmem:[#allocation3 + $0x28] sm:$0xf]
        %v1567 = vld [vmem:[#allocation3 + $0x2c] sm:$0xf]
        %v1570 = vunpack.c.l.b16 %v1566
        %v1571 = vunpack.c.l.b16 %v1567
        %v1572 = vpack.c.b16 %v1571, %v1570
        %1574 = vmatprep.subr.bf16.mxu0 0
        %1575 = vmatpush1.bf16.msra.mxu0 0
        %1576 = vmatprep.subr.bf16.mxu0 0
        %1577 = vmatpush1.bf16.msra.mxu0 0
        %1578 = vmatprep.subr.bf16.mxu0 0
        %1579 = vmatpush1.bf16.msra.mxu0 0
        %1580 = vmatprep.subr.bf16.mxu0 0
        %1581 = vmatpush1.bf16.msra.mxu0 0
        %1582 = vmatprep.subr.bf16.mxu0 0
        %1583 = vmatpush1.bf16.msra.mxu0 0
        %1584 = vmatprep.subr.bf16.mxu0 0
        %1585 = vmatpush1.bf16.msra.mxu0 0
        %1586 = vmatprep.subr.bf16.mxu0 0
        %1587 = vmatpush1.bf16.msra.mxu0 0
        %1588 = vmatprep.subr.bf16.mxu0 0
        %1589 = vmatpush1.bf16.msra.mxu0 %v1572
        %1590 = vmatprep.subr.bf16.mxu0 0
        %1591 = vmatpush2.bf16.msra.mxu0 0
        %1592 = vmatprep.subr.bf16.mxu0 0
        %1593 = vmatpush2.bf16.msra.mxu0 0
        %1594 = vmatprep.subr.bf16.mxu0 0
        %1595 = vmatpush2.bf16.msra.mxu0 0
        %1596 = vmatprep.subr.bf16.mxu0 0
        %1597 = vmatpush2.bf16.msra.mxu0 0
        %1598 = vmatprep.subr.bf16.mxu0 0
        %1599 = vmatpush2.bf16.msra.mxu0 0
        %1600 = vmatprep.subr.bf16.mxu0 0
        %1601 = vmatpush2.bf16.msra.mxu0 0
        %1602 = vmatprep.subr.bf16.mxu0 0
        %1603 = vmatpush2.bf16.msra.mxu0 0
        %1604 = vmatprep.subr.bf16.mxu0 0
        %1605 = vmatpush2.bf16.msra.mxu0 0
        %1606 = vmatprep.mubr.bf16.mxu0 0
        %1607 = vmatmul.mubr.bf16.gmra.mxu0 %v954
        %v1608 = vpop.f32.mrf.mxu0
        %v1609 = vadd.f32 0.0, %v1608
        %v1610 = vpop.f32.mrf.mxu0
        %v1611 = vpop.f32.mrf.mxu0
        %v1612 = vadd.f32 0.0, %v1611
        %v1613 = vpop.f32.mrf.mxu0
        %1614 = vdwg.mxu0
        %vm1615 = vcmp.eq.s32.totalorder %v1162, 5
        %vm1616 = vcmp.eq.s32.totalorder %v1163, 5
        %v1617 = vsel %vm1615, 1, 0
        %v1618 = vsel %vm1616, 1, 0
        %v1619 = vcvt.s32.f32 %v1617
        %v1620 = vcvt.s32.f32 %v1618
        %v1621 = vsub.f32 %v1609, %v1169
        %v1622 = vsub.f32 %v1612, %v1169
        %v1623 = vmul.f32 %v1621, 1.442695
        %v1624 = vpow.pop %v1623
        %v1625 = vmul.f32 %v1622, 1.442695
        %v1626 = vpow.pop %v1625
        %v1627 = vadd.f32 %v1548, %v1624
        %v1628 = vadd.f32 %v1549, %v1626
        %v1629 = vadd.f32 %v1619, %v1620
        %v1630 = vrot.slane %v1629, 4
        %v1631 = vadd.f32 %v1629, %v1630
        %v1632 = vrot.slane %v1631, 2
        %v1633 = vadd.f32 %v1631, %v1632
        %v1634 = vrot.slane %v1633, 1
        %v1635 = vadd.f32 %v1633, %v1634
        %v1636 = vmul.f32 %v1619, %v1609
        %v1637 = vmul.f32 %v1620, %v1612
        %v1638 = vadd.f32 %v1636, %v1637
        %v1639 = vrot.slane %v1638, 4
        %v1640 = vadd.f32 %v1638, %v1639
        %v1641 = vrot.slane %v1640, 2
        %v1642 = vadd.f32 %v1640, %v1641
        %v1643 = vrot.slane %v1642, 1
        %v1644 = vadd.f32 %v1642, %v1643
        %v1645 = vld [vmem:[#allocation3 + $0x30] sm:$0xf]
        %v1646 = vld [vmem:[#allocation3 + $0x34] sm:$0xf]
        %v1649 = vunpack.c.l.b16 %v1645
        %v1650 = vunpack.c.l.b16 %v1646
        %v1651 = vpack.c.b16 %v1650, %v1649
        %1653 = vmatprep.subr.bf16.mxu0 0
        %1654 = vmatpush1.bf16.msra.mxu0 0
        %1655 = vmatprep.subr.bf16.mxu0 0
        %1656 = vmatpush1.bf16.msra.mxu0 0
        %1657 = vmatprep.subr.bf16.mxu0 0
        %1658 = vmatpush1.bf16.msra.mxu0 0
        %1659 = vmatprep.subr.bf16.mxu0 0
        %1660 = vmatpush1.bf16.msra.mxu0 0
        %1661 = vmatprep.subr.bf16.mxu0 0
        %1662 = vmatpush1.bf16.msra.mxu0 0
        %1663 = vmatprep.subr.bf16.mxu0 0
        %1664 = vmatpush1.bf16.msra.mxu0 0
        %1665 = vmatprep.subr.bf16.mxu0 0
        %1666 = vmatpush1.bf16.msra.mxu0 0
        %1667 = vmatprep.subr.bf16.mxu0 0
        %1668 = vmatpush1.bf16.msra.mxu0 %v1651
        %1669 = vmatprep.subr.bf16.mxu0 0
        %1670 = vmatpush2.bf16.msra.mxu0 0
        %1671 = vmatprep.subr.bf16.mxu0 0
        %1672 = vmatpush2.bf16.msra.mxu0 0
        %1673 = vmatprep.subr.bf16.mxu0 0
        %1674 = vmatpush2.bf16.msra.mxu0 0
        %1675 = vmatprep.subr.bf16.mxu0 0
        %1676 = vmatpush2.bf16.msra.mxu0 0
        %1677 = vmatprep.subr.bf16.mxu0 0
        %1678 = vmatpush2.bf16.msra.mxu0 0
        %1679 = vmatprep.subr.bf16.mxu0 0
        %1680 = vmatpush2.bf16.msra.mxu0 0
        %1681 = vmatprep.subr.bf16.mxu0 0
        %1682 = vmatpush2.bf16.msra.mxu0 0
        %1683 = vmatprep.subr.bf16.mxu0 0
        %1684 = vmatpush2.bf16.msra.mxu0 0
        %1685 = vmatprep.mubr.bf16.mxu0 0
        %1686 = vmatmul.mubr.bf16.gmra.mxu0 %v954
        %v1687 = vpop.f32.mrf.mxu0
        %v1688 = vadd.f32 0.0, %v1687
        %v1689 = vpop.f32.mrf.mxu0
        %v1690 = vpop.f32.mrf.mxu0
        %v1691 = vadd.f32 0.0, %v1690
        %v1692 = vpop.f32.mrf.mxu0
        %1693 = vdwg.mxu0
        %vm1694 = vcmp.eq.s32.totalorder %v1162, 6
        %vm1695 = vcmp.eq.s32.totalorder %v1163, 6
        %v1696 = vsel %vm1694, 1, 0
        %v1697 = vsel %vm1695, 1, 0
        %v1698 = vcvt.s32.f32 %v1696
        %v1699 = vcvt.s32.f32 %v1697
        %v1700 = vsub.f32 %v1688, %v1169
        %v1701 = vsub.f32 %v1691, %v1169
        %v1702 = vmul.f32 %v1700, 1.442695
        %v1703 = vpow.pop %v1702
        %v1704 = vmul.f32 %v1701, 1.442695
        %v1705 = vpow.pop %v1704
        %v1706 = vadd.f32 %v1627, %v1703
        %v1707 = vadd.f32 %v1628, %v1705
        %v1708 = vadd.f32 %v1698, %v1699
        %v1709 = vrot.slane %v1708, 4
        %v1710 = vadd.f32 %v1708, %v1709
        %v1711 = vrot.slane %v1710, 2
        %v1712 = vadd.f32 %v1710, %v1711
        %v1713 = vrot.slane %v1712, 1
        %v1714 = vadd.f32 %v1712, %v1713
        %v1715 = vmul.f32 %v1698, %v1688
        %v1716 = vmul.f32 %v1699, %v1691
        %v1717 = vadd.f32 %v1715, %v1716
        %v1718 = vrot.slane %v1717, 4
        %v1719 = vadd.f32 %v1717, %v1718
        %v1720 = vrot.slane %v1719, 2
        %v1721 = vadd.f32 %v1719, %v1720
        %v1722 = vrot.slane %v1721, 1
        %v1723 = vadd.f32 %v1721, %v1722
        %v1724 = vld [vmem:[#allocation3 + $0x38] sm:$0xf]
        %v1725 = vld [vmem:[#allocation3 + $0x3c] sm:$0xf]
        %v1728 = vunpack.c.l.b16 %v1724
        %v1729 = vunpack.c.l.b16 %v1725
        %v1730 = vpack.c.b16 %v1729, %v1728
        %1732 = vmatprep.subr.bf16.mxu0 0
        %1733 = vmatpush1.bf16.msra.mxu0 0
        %1734 = vmatprep.subr.bf16.mxu0 0
        %1735 = vmatpush1.bf16.msra.mxu0 0
        %1736 = vmatprep.subr.bf16.mxu0 0
        %1737 = vmatpush1.bf16.msra.mxu0 0
        %1738 = vmatprep.subr.bf16.mxu0 0
        %1739 = vmatpush1.bf16.msra.mxu0 0
        %1740 = vmatprep.subr.bf16.mxu0 0
        %1741 = vmatpush1.bf16.msra.mxu0 0
        %1742 = vmatprep.subr.bf16.mxu0 0
        %1743 = vmatpush1.bf16.msra.mxu0 0
        %1744 = vmatprep.subr.bf16.mxu0 0
        %1745 = vmatpush1.bf16.msra.mxu0 0
        %1746 = vmatprep.subr.bf16.mxu0 0
        %1747 = vmatpush1.bf16.msra.mxu0 %v1730
        %1748 = vmatprep.subr.bf16.mxu0 0
        %1749 = vmatpush2.bf16.msra.mxu0 0
        %1750 = vmatprep.subr.bf16.mxu0 0
        %1751 = vmatpush2.bf16.msra.mxu0 0
        %1752 = vmatprep.subr.bf16.mxu0 0
        %1753 = vmatpush2.bf16.msra.mxu0 0
        %1754 = vmatprep.subr.bf16.mxu0 0
        %1755 = vmatpush2.bf16.msra.mxu0 0
        %1756 = vmatprep.subr.bf16.mxu0 0
        %1757 = vmatpush2.bf16.msra.mxu0 0
        %1758 = vmatprep.subr.bf16.mxu0 0
        %1759 = vmatpush2.bf16.msra.mxu0 0
        %1760 = vmatprep.subr.bf16.mxu0 0
        %1761 = vmatpush2.bf16.msra.mxu0 0
        %1762 = vmatprep.subr.bf16.mxu0 0
        %1763 = vmatpush2.bf16.msra.mxu0 0
        %1764 = vmatprep.mubr.bf16.mxu0 0
        %1765 = vmatmul.mubr.bf16.gmra.mxu0 %v954
        %v1766 = vpop.f32.mrf.mxu0
        %v1767 = vadd.f32 0.0, %v1766
        %v1768 = vpop.f32.mrf.mxu0
        %v1769 = vpop.f32.mrf.mxu0
        %v1770 = vadd.f32 0.0, %v1769
        %v1771 = vpop.f32.mrf.mxu0
        %1772 = vdwg.mxu0
        %vm1773 = vcmp.eq.s32.totalorder %v1162, 7
        %vm1774 = vcmp.eq.s32.totalorder %v1163, 7
        %v1775 = vsel %vm1773, 1, 0
        %v1776 = vsel %vm1774, 1, 0
        %v1777 = vcvt.s32.f32 %v1775
        %v1778 = vcvt.s32.f32 %v1776
        %v1779 = vsub.f32 %v1767, %v1169
        %v1780 = vsub.f32 %v1770, %v1169
        %v1781 = vmul.f32 %v1779, 1.442695
        %v1782 = vpow.pop %v1781
        %v1783 = vmul.f32 %v1780, 1.442695
        %v1784 = vpow.pop %v1783
        %v1785 = vadd.f32 %v1706, %v1782
        %v1786 = vadd.f32 %v1707, %v1784
        %v1787 = vadd.f32 %v1777, %v1778
        %v1788 = vrot.slane %v1787, 4
        %v1789 = vadd.f32 %v1787, %v1788
        %v1790 = vrot.slane %v1789, 2
        %v1791 = vadd.f32 %v1789, %v1790
        %v1792 = vrot.slane %v1791, 1
        %v1793 = vadd.f32 %v1791, %v1792
        %v1794 = vmul.f32 %v1777, %v1767
        %v1795 = vmul.f32 %v1778, %v1770
        %v1796 = vadd.f32 %v1794, %v1795
        %v1797 = vrot.slane %v1796, 4
        %v1798 = vadd.f32 %v1796, %v1797
        %v1799 = vrot.slane %v1798, 2
        %v1800 = vadd.f32 %v1798, %v1799
        %v1801 = vrot.slane %v1800, 1
        %v1802 = vadd.f32 %v1800, %v1801
        %v1803 = vmax.f32 %v1785, 1e-30
        %v1804 = vmax.f32 %v1786, 1e-30
        %v1805 = vlog2.pop %v1803
        %v1806 = vmul.f32 %v1805, 0.6931472
        %v1807 = vlog2.pop %v1804
        %v1808 = vmul.f32 %v1807, 0.6931472
        %v1809 = vadd.f32 %v1169, %v1806
        %v1810 = vadd.f32 %v1169, %v1808
        %v1811 = vmul.f32 %v1224, %v1809
        %v1812 = vmul.f32 %v1225, %v1810
        %v1813 = vadd.f32 %v1811, %v1812
        %v1814 = vrot.slane %v1813, 4
        %v1815 = vadd.f32 %v1813, %v1814
        %v1816 = vrot.slane %v1815, 2
        %v1817 = vadd.f32 %v1815, %v1816
        %v1818 = vrot.slane %v1817, 1
        %v1819 = vadd.f32 %v1817, %v1818
        %v1820 = vmul.f32 %v1303, %v1809
        %v1821 = vmul.f32 %v1304, %v1810
        %v1822 = vadd.f32 %v1820, %v1821
        %v1823 = vrot.slane %v1822, 4
        %v1824 = vadd.f32 %v1822, %v1823
        %v1825 = vrot.slane %v1824, 2
        %v1826 = vadd.f32 %v1824, %v1825
        %v1827 = vrot.slane %v1826, 1
        %v1828 = vadd.f32 %v1826, %v1827
        %v1829 = vmul.f32 %v1382, %v1809
        %v1830 = vmul.f32 %v1383, %v1810
        %v1831 = vadd.f32 %v1829, %v1830
        %v1832 = vrot.slane %v1831, 4
        %v1833 = vadd.f32 %v1831, %v1832
        %v1834 = vrot.slane %v1833, 2
        %v1835 = vadd.f32 %v1833, %v1834
        %v1836 = vrot.slane %v1835, 1
        %v1837 = vadd.f32 %v1835, %v1836
        %v1838 = vmul.f32 %v1461, %v1809
        %v1839 = vmul.f32 %v1462, %v1810
        %v1840 = vadd.f32 %v1838, %v1839
        %v1841 = vrot.slane %v1840, 4
        %v1842 = vadd.f32 %v1840, %v1841
        %v1843 = vrot.slane %v1842, 2
        %v1844 = vadd.f32 %v1842, %v1843
        %v1845 = vrot.slane %v1844, 1
        %v1846 = vadd.f32 %v1844, %v1845
        %v1847 = vmul.f32 %v1540, %v1809
        %v1848 = vmul.f32 %v1541, %v1810
        %v1849 = vadd.f32 %v1847, %v1848
        %v1850 = vrot.slane %v1849, 4
        %v1851 = vadd.f32 %v1849, %v1850
        %v1852 = vrot.slane %v1851, 2
        %v1853 = vadd.f32 %v1851, %v1852
        %v1854 = vrot.slane %v1853, 1
        %v1855 = vadd.f32 %v1853, %v1854
        %v1856 = vmul.f32 %v1619, %v1809
        %v1857 = vmul.f32 %v1620, %v1810
        %v1858 = vadd.f32 %v1856, %v1857
        %v1859 = vrot.slane %v1858, 4
        %v1860 = vadd.f32 %v1858, %v1859
        %v1861 = vrot.slane %v1860, 2
        %v1862 = vadd.f32 %v1860, %v1861
        %v1863 = vrot.slane %v1862, 1
        %v1864 = vadd.f32 %v1862, %v1863
        %v1865 = vmul.f32 %v1698, %v1809
        %v1866 = vmul.f32 %v1699, %v1810
        %v1867 = vadd.f32 %v1865, %v1866
        %v1868 = vrot.slane %v1867, 4
        %v1869 = vadd.f32 %v1867, %v1868
        %v1870 = vrot.slane %v1869, 2
        %v1871 = vadd.f32 %v1869, %v1870
        %v1872 = vrot.slane %v1871, 1
        %v1873 = vadd.f32 %v1871, %v1872
        %v1874 = vmul.f32 %v1777, %v1809
        %v1875 = vmul.f32 %v1778, %v1810
        %v1876 = vadd.f32 %v1874, %v1875
        %v1877 = vrot.slane %v1876, 4
        %v1878 = vadd.f32 %v1876, %v1877
        %v1879 = vrot.slane %v1878, 2
        %v1880 = vadd.f32 %v1878, %v1879
        %v1881 = vrot.slane %v1880, 1
        %v1882 = vadd.f32 %v1880, %v1881
        %v1883 = vsel %vm1112, %v1819, %v1828
        %vm1884 = vcmask 1041408
        %v1885 = vsel %vm1884, %v1883, %v1837
        %vm1886 = vcmask 1042432
        %v1887 = vsel %vm1886, %v1885, %v1846
        %vm1888 = vcmask 1043456
        %v1889 = vsel %vm1888, %v1887, %v1855
        %vm1890 = vcmask 1044480
        %v1891 = vsel %vm1890, %v1889, %v1864
        %vm1892 = vcmask 1045504
        %v1893 = vsel %vm1892, %v1891, %v1873
        %vm1894 = vcmask 1046528
        %v1895 = vsel %vm1894, %v1893, %v1882
        %v1896 = vsel %vm1112, %v1249, %v1328
        %v1897 = vsel %vm1884, %v1896, %v1407
        %v1898 = vsel %vm1886, %v1897, %v1486
        %v1899 = vsel %vm1888, %v1898, %v1565
        %v1900 = vsel %vm1890, %v1899, %v1644
        %v1901 = vsel %vm1892, %v1900, %v1723
        %v1902 = vsel %vm1894, %v1901, %v1802
        %v1903 = vsub.f32 %v1895, %v1902
        %v1904 = vsel %vm1112, %v1240, %v1319
        %v1905 = vsel %vm1884, %v1904, %v1398
        %v1906 = vsel %vm1886, %v1905, %v1477
        %v1907 = vsel %vm1888, %v1906, %v1556
        %v1908 = vsel %vm1890, %v1907, %v1635
        %v1909 = vsel %vm1892, %v1908, %v1714
        %v1910 = vsel %vm1894, %v1909, %v1793
        %v1911 = vld [vmem:[%s494] sm:$0xff]
        %v1912 = vadd.f32 %v1911, %v1903
        %1913 = vst [vmem:[%s494] sm:$0xff] %v1912
        %v1914 = vld [vmem:[%s501] sm:$0xff]
        %v1915 = vadd.f32 %v1914, %v1910
        %1916 = vst [vmem:[%s501] sm:$0xff] %v1915
        %s1917 = sand.u32 %s234, 1
        %s1918 = scalar_lea.sflag [#allocation6], %s1917
        %s1919 = sand.u32 %s234, 1
        %s1920 = smul.addr %s1919, 2
        %s1921 = scalar_lea.vmem [#allocation5], %s1920
        %s1922 = sand.u32 %s31, 1
        %s1923 = scalar_lea.sflag [#allocation8], %s1922
        %s1924 = sand.u32 %s260, 1
        %s1925 = smul.addr %s1924, 2
        %s1926 = scalar_lea.vmem [#allocation7], %s1925
        %s1927 = sand.u32 %s31, 1
        %s1928 = scalar_lea.sflag [#allocation8], %s1927
        %s1929 = sand.u32 %s286, 1
        %s1930 = smul.addr %s1929, 8
        %s1931 = scalar_lea.vmem [#allocation9], %s1930
        %s1932 = sand.u32 %s312, 1
        %s1933 = scalar_lea.sflag [#allocation11], %s1932
        %s1934 = sand.u32 %s312, 1
        %s1935 = smul.addr %s1934, 8
        %s1936 = scalar_lea.vmem [#allocation10], %s1935
        // Predicated region
        $region53: #{tpu_custom_call.1} parent=47 // pred_check
          %p1937 = pneg %p244
        $region54: #{tpu_custom_call.1} parent=47 // pred_check_branch
          %1939 = sbr.rel (%p1937) target = $region56
        $region55: #{tpu_custom_call.1} parent=47 // pred_region
          %s1941 = ssub.s32 32, 32
          %1942 = vsyncadd %s1918, %s1941
          %s1943 = smul.addr %s35, 32
          %s1944 = scalar_lea.hbm %s7, %s1943
          %s1946 = sshll.u32 %s1921, 4
          %s1947 = int_to_ptr.vmem [resolvable:$true] %s1946
          %1949 = dma.vmem_to_hbm [thread:$0]  %s1947, 32, %s1944, %s1918
        $region56: #{tpu_custom_call.1} parent=47 // pred_fallthru
          _
        // Predicated region
        $region57: #{tpu_custom_call.1} parent=47 // pred_check
          %p1950 = pneg %p270
        $region58: #{tpu_custom_call.1} parent=47 // pred_check_branch
          %1952 = sbr.rel (%p1950) target = $region60
        $region59: #{tpu_custom_call.1} parent=47 // pred_region
          %s1954 = ssub.s32 32, 32
          %1955 = vsyncadd %s1923, %s1954
          %s1956 = smul.addr %s35, 32
          %s1957 = scalar_lea.hbm %s8, %s1956
          %s1959 = sshll.u32 %s1926, 4
          %s1960 = int_to_ptr.vmem [resolvable:$true] %s1959
          %1962 = dma.vmem_to_hbm [thread:$0]  %s1960, 32, %s1957, %s1923
        $region60: #{tpu_custom_call.1} parent=47 // pred_fallthru
          _
        // Predicated region
        $region61: #{tpu_custom_call.1} parent=47 // pred_check
          %p1963 = pneg %p296
        $region62: #{tpu_custom_call.1} parent=47 // pred_check_branch
          %1965 = sbr.rel (%p1963) target = $region64
        $region63: #{tpu_custom_call.1} parent=47 // pred_region
          %s1967 = ssub.s32 128, 128
          %1968 = vsyncadd %s1928, %s1967
          %s1969 = smul.addr %s35, 128
          %s1970 = scalar_lea.hbm %s9, %s1969
          %s1972 = sshll.u32 %s1931, 4
          %s1973 = int_to_ptr.vmem [resolvable:$true] %s1972
          %1975 = dma.vmem_to_hbm [thread:$0]  %s1973, 128, %s1970, %s1928
        $region64: #{tpu_custom_call.1} parent=47 // pred_fallthru
          _
        // Predicated region
        $region65: #{tpu_custom_call.1} parent=47 // pred_check
          %p1976 = pneg %p322
        $region66: #{tpu_custom_call.1} parent=47 // pred_check_branch
          %1978 = sbr.rel (%p1976) target = $region68
        $region67: #{tpu_custom_call.1} parent=47 // pred_region
          %s1980 = ssub.s32 128, 128
          %1981 = vsyncadd %s1933, %s1980
          %s1982 = smul.addr %s35, 128
          %s1983 = scalar_lea.hbm %s10, %s1982
          %s1985 = sshll.u32 %s1936, 4
          %s1986 = int_to_ptr.vmem [resolvable:$true] %s1985
          %1988 = dma.vmem_to_hbm [thread:$0]  %s1986, 128, %s1983, %s1933
        $region68: #{tpu_custom_call.1} parent=47 // pred_fallthru
          _
      $region48: #{tpu_custom_call.1} parent=5 // pred_fallthru
        _
      %p1989 = scmp.le.s32.totalorder 2, %s26
      // Predicated region
      $region69: #{tpu_custom_call.1} parent=5 // pred_check
        %p1990 = pneg %p1989
      $region70: #{tpu_custom_call.1} parent=5 // pred_check_branch
        %1992 = sbr.rel (%p1990) target = $region72
      $region71: #{tpu_custom_call.1} parent=5 // pred_region
        %s1993 = ssub.s32 %s26, 2
        // Predicated region
        $region73: #{tpu_custom_call.1} parent=71 // pred_check
          %p1994 = pneg %p250
        $region74: #{tpu_custom_call.1} parent=71 // pred_check_branch
          %1996 = sbr.rel (%p1994) target = $region76
        $region75: #{tpu_custom_call.1} parent=71 // pred_region
          %s1997 = sand.u32 %s235, 1
          %s1998 = scalar_lea.sflag [#allocation6], %s1997
          %s1999 = sand.u32 %s235, 1
          %s2000 = smul.addr %s1999, 2
          %s2001 = scalar_lea.vmem [#allocation5], %s2000
          %2002 = dma.done %s1998, 32
        $region76: #{tpu_custom_call.1} parent=71 // pred_fallthru
          _
        // Predicated region
        $region77: #{tpu_custom_call.1} parent=71 // pred_check
          %p2003 = pneg %p276
        $region78: #{tpu_custom_call.1} parent=71 // pred_check_branch
          %2005 = sbr.rel (%p2003) target = $region80
        $region79: #{tpu_custom_call.1} parent=71 // pred_region
          %s2006 = sand.u32 %s32, 1
          %s2007 = scalar_lea.sflag [#allocation8], %s2006
          %s2008 = sand.u32 %s261, 1
          %s2009 = smul.addr %s2008, 2
          %s2010 = scalar_lea.vmem [#allocation7], %s2009
          %2011 = dma.done %s2007, 32
        $region80: #{tpu_custom_call.1} parent=71 // pred_fallthru
          _
        // Predicated region
        $region81: #{tpu_custom_call.1} parent=71 // pred_check
          %p2012 = pneg %p302
        $region82: #{tpu_custom_call.1} parent=71 // pred_check_branch
          %2014 = sbr.rel (%p2012) target = $region84
        $region83: #{tpu_custom_call.1} parent=71 // pred_region
          %s2015 = sand.u32 %s32, 1
          %s2016 = scalar_lea.sflag [#allocation8], %s2015
          %s2017 = sand.u32 %s287, 1
          %s2018 = smul.addr %s2017, 8
          %s2019 = scalar_lea.vmem [#allocation9], %s2018
          %2020 = dma.done %s2016, 128
        $region84: #{tpu_custom_call.1} parent=71 // pred_fallthru
          _
        // Predicated region
        $region85: #{tpu_custom_call.1} parent=71 // pred_check
          %p2021 = pneg %p328
        $region86: #{tpu_custom_call.1} parent=71 // pred_check_branch
          %2023 = sbr.rel (%p2021) target = $region88
        $region87: #{tpu_custom_call.1} parent=71 // pred_region
          %s2024 = sand.u32 %s313, 1
          %s2025 = scalar_lea.sflag [#allocation11], %s2024
          %s2026 = sand.u32 %s313, 1
          %s2027 = smul.addr %s2026, 8
          %s2028 = scalar_lea.vmem [#allocation10], %s2027
          %2029 = dma.done %s2025, 128
        $region88: #{tpu_custom_call.1} parent=71 // pred_fallthru
          _
      $region72: #{tpu_custom_call.1} parent=5 // pred_fallthru
        _
    $region6: #{tpu_custom_call.1} parent=1 // loop_footer
      %s30 = sadd.s32 1, %s26
    $region7: #{tpu_custom_call.1} parent=1 // loop_footer_branch
      %25 = sbr.rel target = $region3
    $region8: #{tpu_custom_call.1} parent=1 // loop_exit
      _
    %2030 = vsyncpa [#allocation6], 1
    %s2031 = scalar_lea.sflag [#allocation6], 1
    %2032 = vsyncpa %s2031, 1
    %2033 = vsyncpa [#allocation8], 1
    %s2034 = scalar_lea.sflag [#allocation8], 1
    %2035 = vsyncpa %s2034, 1
    %2036 = vsyncpa [#allocation11], 1
    %s2037 = scalar_lea.sflag [#allocation11], 1
    %2038 = vsyncpa %s2037, 1

</llo_original>
